<compile_context>
chip_gen: v7x
topology: tpu7x:2x2x1
jax: 0.10.0
libtpu: 0.0.40
codegen_flags: <defaults>
</compile_context>

<pallas_src>
import functools

import jax
import jax.numpy as jnp
import numpy as np
from jax.experimental import pallas as pl
from jax.experimental.pallas import tpu as pltpu


# ----------------------------------------------------------------------------
# Pass 1: SAGEConv1 + ReLU, fused with the layer-2 linear projections.
# grid = (row_tiles, max_nonempty_k).  Outputs tr[:,0] = h1 @ w2l (the
# reassociated layer-2 aggregation operand) and tr[:,1] = h1 @ w2r (root
# path), so h1 itself never leaves the kernel.
# ----------------------------------------------------------------------------
def sage_layer1_kernel(ktab_ref, kcnt_ref, a_ref, x_ref, xr_ref, invd_ref,
                       w1l_ref, w1r_ref, b1_ref, w2_ref, tr_ref, acc_ref, *,
                       tk):
    i = pl.program_id(0)
    k = pl.program_id(1)
    nk = pl.num_programs(1)

    @pl.when(k == 0)
    def _():
        acc_ref[...] = jnp.zeros_like(acc_ref)

    # Accumulate only over genuinely non-empty A tiles (block-sparse skip).
    @pl.when(k < kcnt_ref[i])
    def _():
        kt = ktab_ref[i * nk + k]
        start = pl.multiple_of(kt * tk, tk)
        x_blk = x_ref[pl.ds(start, tk), :]                      # (tk, C) bf16
        acc_ref[...] += jnp.dot(a_ref[...].astype(jnp.bfloat16), x_blk,
                                preferred_element_type=jnp.float32)

    @pl.when(k == nk - 1)
    def _():
        aggr1 = acc_ref[...] * invd_ref[...]            # deferred mean scaling
        h1 = (jnp.dot(aggr1, w1l_ref[...], preferred_element_type=jnp.float32)
              + jnp.dot(xr_ref[...], w1r_ref[...],
                        preferred_element_type=jnp.float32)
              + b1_ref[...])
        h1 = jnp.maximum(h1, 0.0)                       # ReLU
        # TODO(synk): Dropout(0.5) implemented as identity (eval mode).
        # Fused layer-2 projections: tr = h1 @ [w2l | w2r]  -> [TM, 2]
        tr_ref[...] = jnp.dot(h1, w2_ref[...],
                              preferred_element_type=jnp.float32)


# ----------------------------------------------------------------------------
# Pass 2: reassociated SAGEConv2 aggregation (A @ t), ReLU, fused fc2.
# Each row tile writes its own fc2 partial into a lane-dense (1,128) output
# block -> the row axis can be "parallel" (megacore) with no races.
# ----------------------------------------------------------------------------
def sage_layer2_fc_kernel(ktab_ref, kcnt_ref, a_ref, t_ref, r_ref, invd_ref,
                          wfc_ref, b2_ref, out_ref, acc_ref, *, tk):
    i = pl.program_id(0)
    k = pl.program_id(1)
    nk = pl.num_programs(1)

    @pl.when(k == 0)
    def _():
        acc_ref[...] = jnp.zeros_like(acc_ref)

    @pl.when(k < kcnt_ref[i])
    def _():
        kt = ktab_ref[i * nk + k]
        start = pl.multiple_of(kt * tk, tk)
        t_blk = t_ref[pl.ds(start, tk), :]                      # (tk, 1) bf16
        acc_ref[...] += jnp.dot(a_ref[...].astype(jnp.bfloat16), t_blk,
                                preferred_element_type=jnp.float32)

    @pl.when(k == nk - 1)
    def _():
        aggr_t = acc_ref[...] * invd_ref[...]           # (tm,1) A_mean @ (h1@w2l)
        h2 = jnp.maximum(aggr_t + r_ref[...] + b2_ref[0, 0], 0.0)
        # TODO(synk): Dropout(0.5) implemented as identity (eval mode).
        part = jnp.dot(wfc_ref[...], h2, preferred_element_type=jnp.float32)
        out_ref[...] = jnp.broadcast_to(part, out_ref.shape)    # lane-dense


# ----------------------------------------------------------------------------
# Host-side helpers
# ----------------------------------------------------------------------------
def build_dense_counts(edge_index, num_nodes):
    """Dense edge-count adjacency (dst rows, src cols) + 1/deg, in numpy."""
    src = np.asarray(edge_index[0]).astype(np.int64)
    dst = np.asarray(edge_index[1]).astype(np.int64)
    counts = np.zeros((num_nodes, num_nodes), np.float32)
    np.add.at(counts, (dst, src), 1.0)
    deg = counts.sum(axis=1, keepdims=True)
    inv_deg = (1.0 / np.maximum(deg, 1.0)).astype(np.float32)
    return counts, inv_deg


def build_block_table(counts, tm, tk):
    """Per-row-tile list of non-empty A column tiles (padded w/ last index)."""
    n = counts.shape[0]
    g, kt_n = n // tm, n // tk
    blk_nnz = counts.reshape(g, tm, kt_n, tk).sum(axis=(1, 3)) > 0   # [g, kt_n]
    kcnt = blk_nnz.sum(axis=1).astype(np.int32)
    max_k = max(int(kcnt.max()), 1)
    ktab = np.zeros((g, max_k), np.int32)
    for r in range(g):
        nz = np.nonzero(blk_nnz[r])[0].astype(np.int32)
        if nz.size == 0:
            nz = np.zeros((1,), np.int32)
        ktab[r, :nz.size] = nz
        ktab[r, nz.size:] = nz[-1]      # pad => same block index => DMA elided
    return ktab.reshape(-1), kcnt, max_k


def gcn_forward(x, edge_index, params, *, tm=256, tk=512):
    n, c = x.shape
    h = params["w1l"].shape[1]
    tm = min(tm, n)
    tk = min(tk, n)
    assert n % tm == 0 and n % tk == 0, "demo requires N divisible by tiles"
    # TODO(synk): the real N=20000 graph needs zero-padding of A/x/wfc to tile
    # multiples before this scales to the reference size.

    counts, inv_deg_np = build_dense_counts(edge_index, n)
    ktab_np, kcnt_np, max_k = build_block_table(counts, tm, tk)
    # TODO(synk): per-(dst,src) edge multiplicity > 127 would overflow int8.
    a_i8 = jnp.asarray(counts.astype(np.int8))       # exact 0/1/count adjacency
    inv_deg = jnp.asarray(inv_deg_np)                 # [N, 1] f32
    ktab = jnp.asarray(ktab_np)                       # [G * max_k] int32 (SMEM)
    kcnt = jnp.asarray(kcnt_np)                       # [G] int32 (SMEM)

    x_bf16 = x.astype(jnp.bfloat16)
    w2 = jnp.concatenate([params["w2l"], params["w2r"]], axis=1)     # [H, 2]

    g = n // tm
    nnz_tiles = int(kcnt_np.sum())
    grid = (g, max_k)
    cparams = pltpu.CompilerParams(
        dimension_semantics=("parallel", "arbitrary"),
        vmem_limit_bytes=32 * 1024 * 1024)

    # ---- Pass 1: SAGEConv1 + ReLU + fused layer-2 projections -> tr [N, 2]
    tr = pl.pallas_call(
        functools.partial(sage_layer1_kernel, tk=tk),
        out_shape=jax.ShapeDtypeStruct((n, 2), jnp.float32),
        grid_spec=pltpu.PrefetchScalarGridSpec(
            num_scalar_prefetch=2,
            grid=grid,
            in_specs=[
                pl.BlockSpec((tm, tk),                          # A tile (int8)
                             lambda i, k, kt, kc: (i, kt[i * max_k + k])),
                pl.BlockSpec((n, c), lambda i, k, kt, kc: (0, 0)),   # x resident (bf16)
                pl.BlockSpec((tm, c), lambda i, k, kt, kc: (i, 0)),  # x root (f32)
                pl.BlockSpec((tm, 1), lambda i, k, kt, kc: (i, 0)),  # inv_deg
                pl.BlockSpec((c, h), lambda i, k, kt, kc: (0, 0)),   # w1l
                pl.BlockSpec((c, h), lambda i, k, kt, kc: (0, 0)),   # w1r
                pl.BlockSpec((1, h), lambda i, k, kt, kc: (0, 0)),   # b1
                pl.BlockSpec((h, 2), lambda i, k, kt, kc: (0, 0)),   # [w2l|w2r]
            ],
            out_specs=pl.BlockSpec((tm, 2), lambda i, k, kt, kc: (i, 0)),
            scratch_shapes=[pltpu.VMEM((tm, c), jnp.float32)],
        ),
        compiler_params=cparams,
        cost_estimate=pl.CostEstimate(
            flops=2 * nnz_tiles * tm * tk * c + 4 * n * c * h + 4 * n * h,
            transcendentals=0,
            bytes_accessed=nnz_tiles * tm * tk + 8 * n * c + 16 * n),
    )(ktab, kcnt, a_i8, x_bf16, x, inv_deg,
      params["w1l"], params["w1r"], params["b1"], w2)

    t_bf16 = tr[:, 0:1].astype(jnp.bfloat16)          # [N,1] aggregation operand
    r_root = tr[:, 1:2]                               # [N,1] f32 root path
    wfc_row = params["wfc"].reshape(1, n)              # lane-major fc2 weights
    b2 = params["b2"].reshape(1, 1)

    # ---- Pass 2: A @ t, ReLU, fused fc2 -> per-row-tile partials [1, G*128]
    partials = pl.pallas_call(
        functools.partial(sage_layer2_fc_kernel, tk=tk),
        out_shape=jax.ShapeDtypeStruct((1, g * 128), jnp.float32),
        grid_spec=pltpu.PrefetchScalarGridSpec(
            num_scalar_prefetch=2,
            grid=grid,
            in_specs=[
                pl.BlockSpec((tm, tk),                          # A tile (int8)
                             lambda i, k, kt, kc: (i, kt[i * max_k + k])),
                pl.BlockSpec((n, 1), lambda i, k, kt, kc: (0, 0)),   # t resident (bf16)
                pl.BlockSpec((tm, 1), lambda i, k, kt, kc: (i, 0)),  # r root (f32)
                pl.BlockSpec((tm, 1), lambda i, k, kt, kc: (i, 0)),  # inv_deg
                pl.BlockSpec((1, tm), lambda i, k, kt, kc: (0, i)),  # wfc slice
                pl.BlockSpec(memory_space=pltpu.MemorySpace.SMEM),   # b2
            ],
            out_specs=pl.BlockSpec((1, 128), lambda i, k, kt, kc: (0, i)),
            scratch_shapes=[pltpu.VMEM((tm, 1), jnp.float32)],
        ),
        compiler_params=cparams,
        cost_estimate=pl.CostEstimate(
            flops=2 * nnz_tiles * tm * tk + 8 * n,
            transcendentals=0,
            bytes_accessed=nnz_tiles * tm * tk + 24 * n),
    )(ktab, kcnt, a_i8, t_bf16, r_root, inv_deg, wfc_row, b2)

    pred = jnp.sum(partials.reshape(g, 128)[:, 0]) + params["bfc"].reshape(())
    return pred.reshape(1)     # shape (1,), matches torch Linear on 1-D input


def init_params(key, in_channels, hidden_channels, num_nodes):
    ks = jax.random.split(key, 8)

    def uniform(k, shape, fan_in):
        bound = 1.0 / jnp.sqrt(jnp.float32(fan_in))
        return jax.random.uniform(k, shape, jnp.float32, -bound, bound)

    return {
        # SAGEConv1: lin_l (aggr path, with bias), lin_r (root path, no bias)
        "w1l": uniform(ks[0], (in_channels, hidden_channels), in_channels),
        "w1r": uniform(ks[1], (in_channels, hidden_channels), in_channels),
        "b1":  uniform(ks[2], (1, hidden_channels), in_channels),
        # SAGEConv2: hidden -> 1
        "w2l": uniform(ks[3], (hidden_channels, 1), hidden_channels),
        "w2r": uniform(ks[4], (hidden_channels, 1), hidden_channels),
        "b2":  uniform(ks[5], (1, 1), hidden_channels),
        # fc2: Linear(num_nodes, 1), stored lane-major [1, N]
        "wfc": uniform(ks[6], (1, num_nodes), num_nodes),
        "bfc": uniform(ks[7], (1, 1), num_nodes),
    }


def gcn_reference(x, counts, inv_deg, params):
    """Pure-JAX reference mirroring the kernel math (bf16 A-matmul operands)."""
    a16 = jnp.asarray(counts).astype(jnp.bfloat16)    # small ints: exact in bf16
    invd = jnp.asarray(inv_deg)
    x16 = x.astype(jnp.bfloat16)
    aggr1 = jnp.dot(a16, x16, preferred_element_type=jnp.float32) * invd
    h1 = jnp.maximum(aggr1 @ params["w1l"] + x @ params["w1r"] + params["b1"],
                     0.0)
    w2 = jnp.concatenate([params["w2l"], params["w2r"]], axis=1)
    tr = h1 @ w2
    t16 = tr[:, 0:1].astype(jnp.bfloat16)
    aggr2 = jnp.dot(a16, t16, preferred_element_type=jnp.float32) * invd
    h2 = jnp.maximum(aggr2 + tr[:, 1:2] + params["b2"].reshape(1, 1), 0.0)
    out = params["wfc"].reshape(1, -1) @ h2 + params["bfc"].reshape(1, 1)
    return out[:, 0]


if __name__ == "__main__":
    N = 1024           # number of graph nodes (stands in for 20000 in the ref)
    IN_CH = 8          # in_channels
    HIDDEN = 32        # hidden_channels
    E = 4096           # number of edges

    key = jax.random.PRNGKey(0)
    k_x, k_dst, k_off, k_param = jax.random.split(key, 4)

    x = jax.random.normal(k_x, (N, IN_CH), jnp.float32)
    # Banded random graph: each edge's source is within 64 nodes of its
    # destination, so several (row_tile, col_tile) blocks of A are empty and
    # the block-sparse tile-skipping path (incl. padded grid steps) is used.
    dst = jax.random.randint(k_dst, (E,), 0, N)
    src = (dst + jax.random.randint(k_off, (E,), 0, 64)) % N
    edge_index = jnp.stack([src, dst], axis=0)        # [2,E], row0=src, row1=dst

    params = init_params(k_param, IN_CH, HIDDEN, N)

    pred = gcn_forward(x, edge_index, params)
    jax.block_until_ready(pred)
    assert pred.shape == (1,)

    counts_ref, inv_deg_ref = build_dense_counts(edge_index, N)
    ref = gcn_reference(x, counts_ref, inv_deg_ref, params)
    np.testing.assert_allclose(np.asarray(pred), np.asarray(ref),
                               rtol=2e-2, atol=1e-2)
    print("KERNEL_OK")
</pallas_src>

<mosaic_0001>
module attributes {stable_mosaic.version = 11 : i64} {
  func.func @sage_layer1_kernel(%arg0: i32, %arg1: i32, %arg2: memref<8xi32, #tpu.memory_space<smem>>, %arg3: memref<4xi32, #tpu.memory_space<smem>>, %arg4: memref<256x512xi8, #tpu.memory_space<vmem>>, %arg5: memref<1024x8xbf16, #tpu.memory_space<vmem>>, %arg6: memref<256x8xf32, #tpu.memory_space<vmem>>, %arg7: memref<256x1xf32, #tpu.memory_space<vmem>>, %arg8: memref<8x32xf32, #tpu.memory_space<vmem>>, %arg9: memref<8x32xf32, #tpu.memory_space<vmem>>, %arg10: memref<1x32xf32, #tpu.memory_space<vmem>>, %arg11: memref<32x2xf32, #tpu.memory_space<vmem>>, %arg12: memref<256x2xf32, #tpu.memory_space<vmem>>, %arg13: memref<256x8xf32, #tpu.memory_space<vmem>>) attributes {dimension_semantics = [#tpu.dimension_semantics<parallel>, #tpu.dimension_semantics<arbitrary>], iteration_bounds = array<i64: 4, 2>, scalar_prefetch = 2 : i64, scratch_operands = 1 : i64, tpu.core_type = #tpu.core_type<tc>, window_params = [{transform_indices = @transform_0, window_bounds = array<i64: 256, 512>}, {pipeline_mode = #tpu.pipeline_mode<synchronous>, transform_indices = @transform_1, window_bounds = array<i64: 1024, 8>}, {transform_indices = @transform_2, window_bounds = array<i64: 256, 8>}, {transform_indices = @transform_3, window_bounds = array<i64: 256, 1>}, {pipeline_mode = #tpu.pipeline_mode<synchronous>, transform_indices = @transform_4, window_bounds = array<i64: 8, 32>}, {pipeline_mode = #tpu.pipeline_mode<synchronous>, transform_indices = @transform_5, window_bounds = array<i64: 8, 32>}, {pipeline_mode = #tpu.pipeline_mode<synchronous>, transform_indices = @transform_6, window_bounds = array<i64: 1, 32>}, {pipeline_mode = #tpu.pipeline_mode<synchronous>, transform_indices = @transform_7, window_bounds = array<i64: 32, 2>}, {transform_indices = @transform_8, window_bounds = array<i64: 256, 2>}]} {
    %c0_i32 = arith.constant 0 : i32
    %0 = arith.cmpi eq, %arg1, %c0_i32 : i32
    %1 = arith.extui %0 : i1 to i32
    %c0_i32_0 = arith.constant 0 : i32
    %2 = arith.cmpi ne, %1, %c0_i32_0 : i32
    scf.if %2 {
      %cst = arith.constant 0.000000e+00 : f32
      %11 = vector.broadcast %cst : f32 to vector<256x8xf32>
      %c0 = arith.constant 0 : index
      %c0_3 = arith.constant 0 : index
      %12 = vector.load %arg13[%c0, %c0_3] : memref<256x8xf32, #tpu.memory_space<vmem>>, vector<256x8xf32>
      tpu.vector_store %arg13[%c0, %c0_3], %11 {strides = array<i32>} : memref<256x8xf32, #tpu.memory_space<vmem>>, vector<256x8xf32>,
    } else {
    }
    %3 = arith.index_cast %arg0 : i32 to index
    %4 = memref.load %arg3[%3] : memref<4xi32, #tpu.memory_space<smem>>
    %5 = arith.cmpi slt, %arg1, %4 : i32
    %6 = arith.extui %5 : i1 to i32
    %c0_i32_1 = arith.constant 0 : i32
    %7 = arith.cmpi ne, %6, %c0_i32_1 : i32
    scf.if %7 {
      %c2_i32 = arith.constant 2 : i32
      %11 = arith.muli %arg0, %c2_i32 : i32
      %12 = arith.addi %11, %arg1 : i32
      %13 = arith.index_cast %12 : i32 to index
      %14 = memref.load %arg2[%13] : memref<8xi32, #tpu.memory_space<smem>>
      %c512_i32 = arith.constant 512 : i32
      %15 = arith.muli %14, %c512_i32 : i32
      %16 = tpu.assume_multiple %15, 512 : i32
      %17 = arith.index_cast %16 : i32 to index
      %c0 = arith.constant 0 : index
      %18 = vector.load %arg5[%17, %c0] : memref<1024x8xbf16, #tpu.memory_space<vmem>>, vector<512x8xbf16>
      %c0_3 = arith.constant 0 : index
      %c0_4 = arith.constant 0 : index
      %19 = vector.load %arg13[%c0_3, %c0_4] : memref<256x8xf32, #tpu.memory_space<vmem>>, vector<256x8xf32>
      %c0_5 = arith.constant 0 : index
      %c0_6 = arith.constant 0 : index
      %20 = vector.load %arg4[%c0_5, %c0_6] : memref<256x512xi8, #tpu.memory_space<vmem>>, vector<256x512xi8>
      %21 = arith.sitofp %20 : vector<256x512xi8> to vector<256x512xbf16>
      %cst = arith.constant dense<0.000000e+00> : vector<256x8xf32>
      %22 = tpu.matmul %21, %18, %cst {dimension_numbers = #tpu.dot_dimension_numbers<[1], [0], [0], [1], [0, 0, 1, 1], [], []>} : vector<256x512xbf16>, vector<512x8xbf16>, vector<256x8xf32> -> vector<256x8xf32>
      %23 = arith.addf %19, %22 : vector<256x8xf32>
      %c0_7 = arith.constant 0 : index
      %c0_8 = arith.constant 0 : index
      %24 = vector.load %arg13[%c0_7, %c0_8] : memref<256x8xf32, #tpu.memory_space<vmem>>, vector<256x8xf32>
      tpu.vector_store %arg13[%c0_7, %c0_8], %23 {strides = array<i32>} : memref<256x8xf32, #tpu.memory_space<vmem>>, vector<256x8xf32>,
    } else {
    }
    %c1_i32 = arith.constant 1 : i32
    %8 = arith.cmpi eq, %arg1, %c1_i32 : i32
    %9 = arith.extui %8 : i1 to i32
    %c0_i32_2 = arith.constant 0 : i32
    %10 = arith.cmpi ne, %9, %c0_i32_2 : i32
    scf.if %10 {
      %c0 = arith.constant 0 : index
      %c0_3 = arith.constant 0 : index
      %11 = vector.load %arg13[%c0, %c0_3] : memref<256x8xf32, #tpu.memory_space<vmem>>, vector<256x8xf32>
      %c0_4 = arith.constant 0 : index
      %c0_5 = arith.constant 0 : index
      %12 = vector.load %arg7[%c0_4, %c0_5] : memref<256x1xf32, #tpu.memory_space<vmem>>, vector<256x1xf32>
      %13 = vector.broadcast %12 : vector<256x1xf32> to vector<256x8xf32>
      %14 = arith.mulf %11, %13 : vector<256x8xf32>
      %c0_6 = arith.constant 0 : index
      %c0_7 = arith.constant 0 : index
      %15 = vector.load %arg8[%c0_6, %c0_7] : memref<8x32xf32, #tpu.memory_space<vmem>>, vector<8x32xf32>
      %cst = arith.constant dense<0.000000e+00> : vector<256x32xf32>
      %16 = tpu.matmul %14, %15, %cst {dimension_numbers = #tpu.dot_dimension_numbers<[1], [0], [0], [1], [0, 0, 1, 1], [], []>} : vector<256x8xf32>, vector<8x32xf32>, vector<256x32xf32> -> vector<256x32xf32>
      %c0_8 = arith.constant 0 : index
      %c0_9 = arith.constant 0 : index
      %17 = vector.load %arg6[%c0_8, %c0_9] : memref<256x8xf32, #tpu.memory_space<vmem>>, vector<256x8xf32>
      %c0_10 = arith.constant 0 : index
      %c0_11 = arith.constant 0 : index
      %18 = vector.load %arg9[%c0_10, %c0_11] : memref<8x32xf32, #tpu.memory_space<vmem>>, vector<8x32xf32>
      %cst_12 = arith.constant dense<0.000000e+00> : vector<256x32xf32>
      %19 = tpu.matmul %17, %18, %cst_12 {dimension_numbers = #tpu.dot_dimension_numbers<[1], [0], [0], [1], [0, 0, 1, 1], [], []>} : vector<256x8xf32>, vector<8x32xf32>, vector<256x32xf32> -> vector<256x32xf32>
      %20 = arith.addf %16, %19 : vector<256x32xf32>
      %c0_13 = arith.constant 0 : index
      %c0_14 = arith.constant 0 : index
      %21 = vector.load %arg10[%c0_13, %c0_14] : memref<1x32xf32, #tpu.memory_space<vmem>>, vector<1x32xf32>
      %22 = vector.broadcast %21 : vector<1x32xf32> to vector<256x32xf32>
      %23 = arith.addf %20, %22 : vector<256x32xf32>
      %cst_15 = arith.constant 0.000000e+00 : f32
      %24 = vector.broadcast %cst_15 : f32 to vector<256x32xf32>
      %25 = arith.maximumf %23, %24 : vector<256x32xf32>
      %c0_16 = arith.constant 0 : index
      %c0_17 = arith.constant 0 : index
      %26 = vector.load %arg11[%c0_16, %c0_17] : memref<32x2xf32, #tpu.memory_space<vmem>>, vector<32x2xf32>
      %cst_18 = arith.constant dense<0.000000e+00> : vector<256x2xf32>
      %27 = tpu.matmul %25, %26, %cst_18 {dimension_numbers = #tpu.dot_dimension_numbers<[1], [0], [0], [1], [0, 0, 1, 1], [], []>} : vector<256x32xf32>, vector<32x2xf32>, vector<256x2xf32> -> vector<256x2xf32>
      %c0_19 = arith.constant 0 : index
      %c0_20 = arith.constant 0 : index
      %28 = vector.load %arg12[%c0_19, %c0_20] : memref<256x2xf32, #tpu.memory_space<vmem>>, vector<256x2xf32>
      tpu.vector_store %arg12[%c0_19, %c0_20], %27 {strides = array<i32>} : memref<256x2xf32, #tpu.memory_space<vmem>>, vector<256x2xf32>,
    } else {
    }
    return
  }
  func.func @transform_0(%arg0: i32, %arg1: i32, %arg2: memref<8xi32, #tpu.memory_space<smem>>, %arg3: memref<4xi32, #tpu.memory_space<smem>>) -> (i32, i32) {
    %c2_i32 = arith.constant 2 : i32
    %0 = arith.muli %arg0, %c2_i32 : i32
    %1 = arith.addi %0, %arg1 : i32
    %2 = arith.index_cast %1 : i32 to index
    %3 = memref.load %arg2[%2] : memref<8xi32, #tpu.memory_space<smem>>
    %c0_i32 = arith.constant 0 : i32
    return %arg0, %3 : i32, i32
  }
  func.func @transform_1(%arg0: i32, %arg1: i32, %arg2: memref<8xi32, #tpu.memory_space<smem>>, %arg3: memref<4xi32, #tpu.memory_space<smem>>) -> (i32, i32) {
    %c0_i32 = arith.constant 0 : i32
    %c0_i32_0 = arith.constant 0 : i32
    %c0_i32_1 = arith.constant 0 : i32
    return %c0_i32, %c0_i32_0 : i32, i32
  }
  func.func @transform_2(%arg0: i32, %arg1: i32, %arg2: memref<8xi32, #tpu.memory_space<smem>>, %arg3: memref<4xi32, #tpu.memory_space<smem>>) -> (i32, i32) {
    %c0_i32 = arith.constant 0 : i32
    %c0_i32_0 = arith.constant 0 : i32
    return %arg0, %c0_i32 : i32, i32
  }
  func.func @transform_3(%arg0: i32, %arg1: i32, %arg2: memref<8xi32, #tpu.memory_space<smem>>, %arg3: memref<4xi32, #tpu.memory_space<smem>>) -> (i32, i32) {
    %c0_i32 = arith.constant 0 : i32
    %c0_i32_0 = arith.constant 0 : i32
    return %arg0, %c0_i32 : i32, i32
  }
  func.func @transform_4(%arg0: i32, %arg1: i32, %arg2: memref<8xi32, #tpu.memory_space<smem>>, %arg3: memref<4xi32, #tpu.memory_space<smem>>) -> (i32, i32) {
    %c0_i32 = arith.constant 0 : i32
    %c0_i32_0 = arith.constant 0 : i32
    %c0_i32_1 = arith.constant 0 : i32
    return %c0_i32, %c0_i32_0 : i32, i32
  }
  func.func @transform_5(%arg0: i32, %arg1: i32, %arg2: memref<8xi32, #tpu.memory_space<smem>>, %arg3: memref<4xi32, #tpu.memory_space<smem>>) -> (i32, i32) {
    %c0_i32 = arith.constant 0 : i32
    %c0_i32_0 = arith.constant 0 : i32
    %c0_i32_1 = arith.constant 0 : i32
    return %c0_i32, %c0_i32_0 : i32, i32
  }
  func.func @transform_6(%arg0: i32, %arg1: i32, %arg2: memref<8xi32, #tpu.memory_space<smem>>, %arg3: memref<4xi32, #tpu.memory_space<smem>>) -> (i32, i32) {
    %c0_i32 = arith.constant 0 : i32
    %c0_i32_0 = arith.constant 0 : i32
    %c0_i32_1 = arith.constant 0 : i32
    return %c0_i32, %c0_i32_0 : i32, i32
  }
  func.func @transform_7(%arg0: i32, %arg1: i32, %arg2: memref<8xi32, #tpu.memory_space<smem>>, %arg3: memref<4xi32, #tpu.memory_space<smem>>) -> (i32, i32) {
    %c0_i32 = arith.constant 0 : i32
    %c0_i32_0 = arith.constant 0 : i32
    %c0_i32_1 = arith.constant 0 : i32
    return %c0_i32, %c0_i32_0 : i32, i32
  }
  func.func @transform_8(%arg0: i32, %arg1: i32, %arg2: memref<8xi32, #tpu.memory_space<smem>>, %arg3: memref<4xi32, #tpu.memory_space<smem>>) -> (i32, i32) {
    %c0_i32 = arith.constant 0 : i32
    %c0_i32_0 = arith.constant 0 : i32
    return %arg0, %c0_i32 : i32, i32
  }
}

</mosaic_0001>

<llo_original>
// kernel: tpu_custom_call.1
$region0: #{tpu_custom_call.1}
  #allocation0 [shape = 'u32[]', space=smem, size = 0x4, offset = 0x4, fixed_abs, tag = 'smem constant byte address 0x4 - core index']
  #allocation1 [shape = 'u32[144,128]{1,0:T(1,128)}', space=vmem, size = 0x12000, scoped, tag = 'internal scratch']
  #allocation2 [shape = 'f32[256,8]{1,0:T(8,128)}', space=vmem, size = 0x20000, scoped, tag = 'scratch operand']
  #allocation3 [shape = 's32[1]{0}', space=sflag, size = 0x4, scoped, tag = 'scoped memory for tpu_custom_call.1']
  #allocation4 [shape = 'u8[512]{0}', space=smem, size = 0x200, scoped, tag = 'prefetched SMEM operand 0']
  #allocation5 [shape = 'u8[512]{0}', space=smem, size = 0x200, scoped, tag = 'prefetched SMEM operand 1']
  %s0 = inlined_call_operand.vmem [shape: s32[8], index: 0, kind: input, shape index: {}]
  %s1 = inlined_call_operand.vmem [shape: s32[4], index: 1, kind: input, shape index: {}]
  %s2 = inlined_call_operand.vmem [shape: s8[1024,1024], index: 2, kind: input, shape index: {}]
  %s3 = inlined_call_operand.vmem [shape: bf16[1024,8], index: 3, kind: input, shape index: {}]
  %s4 = inlined_call_operand.vmem [shape: f32[1024,8], index: 4, kind: input, shape index: {}]
  %s5 = inlined_call_operand.vmem [shape: f32[1024,1], index: 5, kind: input, shape index: {}]
  %s6 = inlined_call_operand.vmem [shape: f32[8,32], index: 6, kind: input, shape index: {}]
  %s7 = inlined_call_operand.vmem [shape: f32[8,32], index: 7, kind: input, shape index: {}]
  %s8 = inlined_call_operand.vmem [shape: f32[1,32], index: 8, kind: input, shape index: {}]
  %s9 = inlined_call_operand.vmem [shape: f32[32,2], index: 9, kind: input, shape index: {}]
  %s10 = inlined_call_operand.vmem [shape: f32[1024,2], index: 10, kind: output, shape index: {}]
  %s11 = sld [smem:[#allocation0]]
  $region100: #{tpu_custom_call.1} parent=0
    _
  %s13 = ssub.s32 1, %s11
  %s14 = scalar_select 0, %s13, %s11
  %s15 = sshll.u32 %s0, 4
  %s16 = int_to_ptr.vmem [resolvable:$true] %s15
  %18 = dma.vmem_to_smem %s16, 16, [#allocation4], [#allocation3]
  %s19 = sshll.u32 %s1, 4
  %s20 = int_to_ptr.vmem [resolvable:$true] %s19
  %22 = dma.vmem_to_smem %s20, 16, [#allocation5], [#allocation3]
  %23 = dma.done [#allocation3], 32
  %24 = sfence
  $region1: #{tpu_custom_call.1} parent=0
    #allocation6 [shape = 'u8[262144]{0}', space=vmem, size = 0x40000, scoped, tag = 'input window, operand 2']
    loop: start=0, step=1, limit=10
    $region2: #{tpu_custom_call.1} parent=1 // loop_pre_header
      _
    $region3: #{tpu_custom_call.1} parent=1 // loop_header
      %s26 = sphi 0, %s30
      %p27 = scmp.ge.s32.totalorder %s26, 10
      %s33 = sphi 0, %s45
      %s34 = sphi 0, %s41
      %s35 = sphi 0, %s33
      %s36 = sphi 0, %s34
      %s37 = sphi 0, %s35
      %s38 = sphi 0, %s36
      %s56 = sphi 0, %s58
      %s59 = sphi 0, %s56
      %s60 = sphi 0, %s59
      %s76 = sphi 0, %s60
      %s80 = sphi 0, %s80
      %s82 = sphi 0, %s80
      %s83 = sphi 0, %s82
      %s97 = sphi 0, %s83
      %s103 = sphi 0, %s105
      %s106 = sphi 0, %s103
      %s107 = sphi 0, %s106
      %s123 = sphi 0, %s107
      %s129 = sphi 0, %s131
      %s132 = sphi 0, %s129
      %s133 = sphi 0, %s132
      %s149 = sphi 0, %s133
      %s153 = sphi 0, %s153
      %s155 = sphi 0, %s153
      %s156 = sphi 0, %s155
      %s170 = sphi 0, %s156
      %s174 = sphi 0, %s174
      %s176 = sphi 0, %s174
      %s177 = sphi 0, %s176
      %s191 = sphi 0, %s177
      %s195 = sphi 0, %s195
      %s197 = sphi 0, %s195
      %s198 = sphi 0, %s197
      %s212 = sphi 0, %s198
      %s216 = sphi 0, %s216
      %s218 = sphi 0, %s216
      %s219 = sphi 0, %s218
      %s233 = sphi 0, %s219
      %s239 = sphi 0, %s241
      %s242 = sphi 0, %s239
      %s243 = sphi 0, %s242
      %s259 = sphi 0, %s243
    $region4: #{tpu_custom_call.1} parent=1 // loop_header_branch
      %29 = sbr.rel (%p27) target = $region8
    $region5: #{tpu_custom_call.1} parent=1 // loop_body
      %s31 = ssub.s32 %s26, 1
      %s32 = ssub.s32 %s26, 2
      %s39 = sadd.s32 1, %s34
      %p40 = scmp.ge.s32.totalorder %s39, 2
      %s41 = scalar_select %p40, 0, %s39
      %s42 = sadd.s32 1, %s33
      %s43 = scalar_select %p40, %s42, %s33
      %p44 = scmp.ge.s32.totalorder %s43, 4
      %s45 = scalar_select %p44, 0, %s43
      %s46 = smul.u32 %s33, 2
      %s47 = sadd.s32 %s46, %s34
      %s48 = sld [smem:[#allocation4 + %s47]]
      %s49 = smul.u32 %s45, 2
      %s50 = sadd.s32 %s49, %s41
      %s51 = sld [smem:[#allocation4 + %s50]]
      %s52 = ssub.s32 %s33, %s45
      %s53 = ssub.s32 %s48, %s51
      %s54 = sor.u32 %s52, %s53
      %p55 = scmp.eq.s32.totalorder %s54, 0
      %s57 = sadd.s32 %s56, 1
      %s58 = scalar_select %p55, %s56, %s57
      %p61 = pneg %p55
      %p62 = scmp.eq.s32.totalorder %s26, 7
      %p63 = por %p61, %p62
      %p64 = scmp.ne.s32.totalorder %s56, %s59
      %p65 = scmp.eq.s32.totalorder %s26, 0
      %p66 = por %p64, %p65
      %p67 = scmp.ne.s32.totalorder %s56, %s59
      %p68 = scmp.eq.s32.totalorder %s31, 7
      %p69 = por %p67, %p68
      %p70 = scmp.ne.s32.totalorder %s59, %s60
      %p71 = scmp.eq.s32.totalorder %s31, 0
      %p72 = por %p70, %p71
      %p73 = scmp.ne.s32.totalorder %s59, %s60
      %p74 = scmp.eq.s32.totalorder %s32, 7
      %p75 = por %p73, %p74
      %p77 = scmp.ne.s32.totalorder %s60, %s76
      %p78 = scmp.eq.s32.totalorder %s32, 0
      %p79 = por %p77, %p78
      %s81 = sadd.s32 %s80, 1
      %p84 = scmp.eq.s32.totalorder %s26, 7
      %p85 = scmp.ne.s32.totalorder %s80, %s82
      %p86 = scmp.eq.s32.totalorder %s26, 0
      %p87 = por %p85, %p86
      %p88 = scmp.ne.s32.totalorder %s80, %s82
      %p89 = scmp.eq.s32.totalorder %s31, 7
      %p90 = por %p88, %p89
      %p91 = scmp.ne.s32.totalorder %s82, %s83
      %p92 = scmp.eq.s32.totalorder %s31, 0
      %p93 = por %p91, %p92
      %p94 = scmp.ne.s32.totalorder %s82, %s83
      %p95 = scmp.eq.s32.totalorder %s32, 7
      %p96 = por %p94, %p95
      %p98 = scmp.ne.s32.totalorder %s83, %s97
      %p99 = scmp.eq.s32.totalorder %s32, 0
      %p100 = por %p98, %p99
      %s101 = ssub.s32 %s33, %s45
      %p102 = scmp.eq.s32.totalorder %s101, 0
      %s104 = sadd.s32 %s103, 1
      %s105 = scalar_select %p102, %s103, %s104
      %p108 = pneg %p102
      %p109 = scmp.eq.s32.totalorder %s26, 7
      %p110 = por %p108, %p109
      %p111 = scmp.ne.s32.totalorder %s103, %s106
      %p112 = scmp.eq.s32.totalorder %s26, 0
      %p113 = por %p111, %p112
      %p114 = scmp.ne.s32.totalorder %s103, %s106
      %p115 = scmp.eq.s32.totalorder %s31, 7
      %p116 = por %p114, %p115
      %p117 = scmp.ne.s32.totalorder %s106, %s107
      %p118 = scmp.eq.s32.totalorder %s31, 0
      %p119 = por %p117, %p118
      %p120 = scmp.ne.s32.totalorder %s106, %s107
      %p121 = scmp.eq.s32.totalorder %s32, 7
      %p122 = por %p120, %p121
      %p124 = scmp.ne.s32.totalorder %s107, %s123
      %p125 = scmp.eq.s32.totalorder %s32, 0
      %p126 = por %p124, %p125
      %s127 = ssub.s32 %s33, %s45
      %p128 = scmp.eq.s32.totalorder %s127, 0
      %s130 = sadd.s32 %s129, 1
      %s131 = scalar_select %p128, %s129, %s130
      %p134 = pneg %p128
      %p135 = scmp.eq.s32.totalorder %s26, 7
      %p136 = por %p134, %p135
      %p137 = scmp.ne.s32.totalorder %s129, %s132
      %p138 = scmp.eq.s32.totalorder %s26, 0
      %p139 = por %p137, %p138
      %p140 = scmp.ne.s32.totalorder %s129, %s132
      %p141 = scmp.eq.s32.totalorder %s31, 7
      %p142 = por %p140, %p141
      %p143 = scmp.ne.s32.totalorder %s132, %s133
      %p144 = scmp.eq.s32.totalorder %s31, 0
      %p145 = por %p143, %p144
      %p146 = scmp.ne.s32.totalorder %s132, %s133
      %p147 = scmp.eq.s32.totalorder %s32, 7
      %p148 = por %p146, %p147
      %p150 = scmp.ne.s32.totalorder %s133, %s149
      %p151 = scmp.eq.s32.totalorder %s32, 0
      %p152 = por %p150, %p151
      %s154 = sadd.s32 %s153, 1
      %p157 = scmp.eq.s32.totalorder %s26, 7
      %p158 = scmp.ne.s32.totalorder %s153, %s155
      %p159 = scmp.eq.s32.totalorder %s26, 0
      %p160 = por %p158, %p159
      %p161 = scmp.ne.s32.totalorder %s153, %s155
      %p162 = scmp.eq.s32.totalorder %s31, 7
      %p163 = por %p161, %p162
      %p164 = scmp.ne.s32.totalorder %s155, %s156
      %p165 = scmp.eq.s32.totalorder %s31, 0
      %p166 = por %p164, %p165
      %p167 = scmp.ne.s32.totalorder %s155, %s156
      %p168 = scmp.eq.s32.totalorder %s32, 7
      %p169 = por %p167, %p168
      %p171 = scmp.ne.s32.totalorder %s156, %s170
      %p172 = scmp.eq.s32.totalorder %s32, 0
      %p173 = por %p171, %p172
      %s175 = sadd.s32 %s174, 1
      %p178 = scmp.eq.s32.totalorder %s26, 7
      %p179 = scmp.ne.s32.totalorder %s174, %s176
      %p180 = scmp.eq.s32.totalorder %s26, 0
      %p181 = por %p179, %p180
      %p182 = scmp.ne.s32.totalorder %s174, %s176
      %p183 = scmp.eq.s32.totalorder %s31, 7
      %p184 = por %p182, %p183
      %p185 = scmp.ne.s32.totalorder %s176, %s177
      %p186 = scmp.eq.s32.totalorder %s31, 0
      %p187 = por %p185, %p186
      %p188 = scmp.ne.s32.totalorder %s176, %s177
      %p189 = scmp.eq.s32.totalorder %s32, 7
      %p190 = por %p188, %p189
      %p192 = scmp.ne.s32.totalorder %s177, %s191
      %p193 = scmp.eq.s32.totalorder %s32, 0
      %p194 = por %p192, %p193
      %s196 = sadd.s32 %s195, 1
      %p199 = scmp.eq.s32.totalorder %s26, 7
      %p200 = scmp.ne.s32.totalorder %s195, %s197
      %p201 = scmp.eq.s32.totalorder %s26, 0
      %p202 = por %p200, %p201
      %p203 = scmp.ne.s32.totalorder %s195, %s197
      %p204 = scmp.eq.s32.totalorder %s31, 7
      %p205 = por %p203, %p204
      %p206 = scmp.ne.s32.totalorder %s197, %s198
      %p207 = scmp.eq.s32.totalorder %s31, 0
      %p208 = por %p206, %p207
      %p209 = scmp.ne.s32.totalorder %s197, %s198
      %p210 = scmp.eq.s32.totalorder %s32, 7
      %p211 = por %p209, %p210
      %p213 = scmp.ne.s32.totalorder %s198, %s212
      %p214 = scmp.eq.s32.totalorder %s32, 0
      %p215 = por %p213, %p214
      %s217 = sadd.s32 %s216, 1
      %p220 = scmp.eq.s32.totalorder %s26, 7
      %p221 = scmp.ne.s32.totalorder %s216, %s218
      %p222 = scmp.eq.s32.totalorder %s26, 0
      %p223 = por %p221, %p222
      %p224 = scmp.ne.s32.totalorder %s216, %s218
      %p225 = scmp.eq.s32.totalorder %s31, 7
      %p226 = por %p224, %p225
      %p227 = scmp.ne.s32.totalorder %s218, %s219
      %p228 = scmp.eq.s32.totalorder %s31, 0
      %p229 = por %p227, %p228
      %p230 = scmp.ne.s32.totalorder %s218, %s219
      %p231 = scmp.eq.s32.totalorder %s32, 7
      %p232 = por %p230, %p231
      %p234 = scmp.ne.s32.totalorder %s219, %s233
      %p235 = scmp.eq.s32.totalorder %s32, 0
      %p236 = por %p234, %p235
      %s237 = ssub.s32 %s33, %s45
      %p238 = scmp.eq.s32.totalorder %s237, 0
      %s240 = sadd.s32 %s239, 1
      %s241 = scalar_select %p238, %s239, %s240
      %p244 = pneg %p238
      %p245 = scmp.eq.s32.totalorder %s26, 7
      %p246 = por %p244, %p245
      %p247 = scmp.ne.s32.totalorder %s239, %s242
      %p248 = scmp.eq.s32.totalorder %s26, 0
      %p249 = por %p247, %p248
      %p250 = scmp.ne.s32.totalorder %s239, %s242
      %p251 = scmp.eq.s32.totalorder %s31, 7
      %p252 = por %p250, %p251
      %p253 = scmp.ne.s32.totalorder %s242, %s243
      %p254 = scmp.eq.s32.totalorder %s31, 0
      %p255 = por %p253, %p254
      %p256 = scmp.ne.s32.totalorder %s242, %s243
      %p257 = scmp.eq.s32.totalorder %s32, 7
      %p258 = por %p256, %p257
      %p260 = scmp.ne.s32.totalorder %s243, %s259
      %p261 = scmp.eq.s32.totalorder %s32, 0
      %p262 = por %p260, %p261
      %p263 = scmp.le.s32.totalorder 1, %s26
      %p264 = scmp.lt.s32.totalorder %s26, 9
      %p265 = pnand %p263, %p264
      %p266 = pneg %p265
      // Predicated region
      $region9: #{tpu_custom_call.1} parent=5 // pred_check
        _
      $region10: #{tpu_custom_call.1} parent=5 // pred_check_branch
        %268 = sbr.rel (%p265) target = $region12
      $region11: #{tpu_custom_call.1} parent=5 // pred_region
        %s269 = ssub.s32 %s26, 1
        // Predicated region
        $region13: #{tpu_custom_call.1} parent=11 // pred_check
          %p270 = pneg %p93
        $region14: #{tpu_custom_call.1} parent=11 // pred_check_branch
          %272 = sbr.rel (%p270) target = $region16
        $region15: #{tpu_custom_call.1} parent=11 // pred_region
          _
        $region16: #{tpu_custom_call.1} parent=11 // pred_fallthru
          _
        // Predicated region
        $region17: #{tpu_custom_call.1} parent=11 // pred_check
          %p273 = pneg %p166
        $region18: #{tpu_custom_call.1} parent=11 // pred_check_branch
          %275 = sbr.rel (%p273) target = $region20
        $region19: #{tpu_custom_call.1} parent=11 // pred_region
          _
        $region20: #{tpu_custom_call.1} parent=11 // pred_fallthru
          _
        // Predicated region
        $region21: #{tpu_custom_call.1} parent=11 // pred_check
          %p276 = pneg %p187
        $region22: #{tpu_custom_call.1} parent=11 // pred_check_branch
          %278 = sbr.rel (%p276) target = $region24
        $region23: #{tpu_custom_call.1} parent=11 // pred_region
          _
        $region24: #{tpu_custom_call.1} parent=11 // pred_fallthru
          _
        // Predicated region
        $region25: #{tpu_custom_call.1} parent=11 // pred_check
          %p279 = pneg %p208
        $region26: #{tpu_custom_call.1} parent=11 // pred_check_branch
          %281 = sbr.rel (%p279) target = $region28
        $region27: #{tpu_custom_call.1} parent=11 // pred_region
          _
        $region28: #{tpu_custom_call.1} parent=11 // pred_fallthru
          _
        // Predicated region
        $region29: #{tpu_custom_call.1} parent=11 // pred_check
          %p282 = pneg %p229
        $region30: #{tpu_custom_call.1} parent=11 // pred_check_branch
          %284 = sbr.rel (%p282) target = $region32
        $region31: #{tpu_custom_call.1} parent=11 // pred_region
          _
        $region32: #{tpu_custom_call.1} parent=11 // pred_fallthru
          _
      $region12: #{tpu_custom_call.1} parent=5 // pred_fallthru
        _
      %p285 = scmp.lt.s32.totalorder %s26, 8
      // Predicated region
      $region33: #{tpu_custom_call.1} parent=5 // pred_check
        %p286 = pneg %p285
      $region34: #{tpu_custom_call.1} parent=5 // pred_check_branch
        %288 = sbr.rel (%p286) target = $region36
      $region35: #{tpu_custom_call.1} parent=5 // pred_region
        // Predicated region
        $region37: #{tpu_custom_call.1} parent=35 // pred_check
          %p289 = pneg %p66
        $region38: #{tpu_custom_call.1} parent=35 // pred_check_branch
          %291 = sbr.rel (%p289) target = $region40
        $region39: #{tpu_custom_call.1} parent=35 // pred_region
          %s292 = sand.u32 %s56, 1
          %s293 = sand.u32 %s56, 1
          %s294 = smul.addr %s293, 256
          %s295 = scalar_lea.vmem [#allocation6], %s294
          %s296 = smul.u32 %s33, 2
          %s297 = sadd.s32 %s296, %s34
          %s298 = sld [smem:[#allocation4 + %s297]]
          %s299 = smul.u32 8, %s33
          %s300 = smul.u32 4, %s298
          %s301 = smul.addr %s299, 8
          %s302 = sadd.s32 %s300, %s301
          %s303 = smul.addr %s302, 8
          %s304 = scalar_lea.vmem %s2, %s303
          // Predicated region
          $region41: #{tpu_custom_call.1} parent=39 // pred_check
            _
          $region42: #{tpu_custom_call.1} parent=39 // pred_check_branch
            %306 = sbr.rel (0) target = $region44
          $region43: #{tpu_custom_call.1} parent=39 // pred_region
            // Predicated region
            $region45: #{tpu_custom_call.1} parent=43 // pred_check
              _
            $region46: #{tpu_custom_call.1} parent=43 // pred_check_branch
              %308 = sbr.rel (0) target = $region48
            $region47: #{tpu_custom_call.1} parent=43 // pred_region
              loop: start=0, step=1, limit=1
              $region49: #{tpu_custom_call.1} parent=47 // loop_pre_header
                _
              $region50: #{tpu_custom_call.1} parent=47 // loop_header
                %s310 = sphi 0, %s314
                %p311 = scmp.ge.s32.totalorder %s310, 1
                %s315 = sphi %s304, %s304
                %s316 = sphi %s295, %s295
              $region51: #{tpu_custom_call.1} parent=47 // loop_header_branch
                %313 = sbr.rel (%p311) target = $region55
              $region52: #{tpu_custom_call.1} parent=47 // loop_body
                %v317 = vld [vmem:[%s315] sm:$0xff]
                %318 = vst [vmem:[%s316] sm:$0xff] %v317
                %v319 = vld [vmem:[%s315 + $0x8] sm:$0xff]
                %320 = vst [vmem:[%s316 + $0x8] sm:$0xff] %v319
                %v321 = vld [vmem:[%s315 + $0x10] sm:$0xff]
                %322 = vst [vmem:[%s316 + $0x10] sm:$0xff] %v321
                %v323 = vld [vmem:[%s315 + $0x18] sm:$0xff]
                %324 = vst [vmem:[%s316 + $0x18] sm:$0xff] %v323
                %v325 = vld [vmem:[%s315 + $0x40] sm:$0xff]
                %326 = vst [vmem:[%s316 + $0x20] sm:$0xff] %v325
                %v327 = vld [vmem:[%s315 + $0x48] sm:$0xff]
                %328 = vst [vmem:[%s316 + $0x28] sm:$0xff] %v327
                %v329 = vld [vmem:[%s315 + $0x50] sm:$0xff]
                %330 = vst [vmem:[%s316 + $0x30] sm:$0xff] %v329
                %v331 = vld [vmem:[%s315 + $0x58] sm:$0xff]
                %332 = vst [vmem:[%s316 + $0x38] sm:$0xff] %v331
                %v333 = vld [vmem:[%s315 + $0x80] sm:$0xff]
                %334 = vst [vmem:[%s316 + $0x40] sm:$0xff] %v333
                %v335 = vld [vmem:[%s315 + $0x88] sm:$0xff]
                %336 = vst [vmem:[%s316 + $0x48] sm:$0xff] %v335
                %v337 = vld [vmem:[%s315 + $0x90] sm:$0xff]
                %338 = vst [vmem:[%s316 + $0x50] sm:$0xff] %v337
                %v339 = vld [vmem:[%s315 + $0x98] sm:$0xff]
                %340 = vst [vmem:[%s316 + $0x58] sm:$0xff] %v339
                %v341 = vld [vmem:[%s315 + $0xc0] sm:$0xff]
                %342 = vst [vmem:[%s316 + $0x60] sm:$0xff] %v341
                %v343 = vld [vmem:[%s315 + $0xc8] sm:$0xff]
                %344 = vst [vmem:[%s316 + $0x68] sm:$0xff] %v343
                %v345 = vld [vmem:[%s315 + $0xd0] sm:$0xff]
                %346 = vst [vmem:[%s316 + $0x70] sm:$0xff] %v345
                %v347 = vld [vmem:[%s315 + $0xd8] sm:$0xff]
                %348 = vst [vmem:[%s316 + $0x78] sm:$0xff] %v347
                %v349 = vld [vmem:[%s315 + $0x100] sm:$0xff]
                %350 = vst [vmem:[%s316 + $0x80] sm:$0xff] %v349
                %v351 = vld [vmem:[%s315 + $0x108] sm:$0xff]
                %352 = vst [vmem:[%s316 + $0x88] sm:$0xff] %v351
                %v353 = vld [vmem:[%s315 + $0x110] sm:$0xff]
                %354 = vst [vmem:[%s316 + $0x90] sm:$0xff] %v353
                %v355 = vld [vmem:[%s315 + $0x118] sm:$0xff]
                %356 = vst [vmem:[%s316 + $0x98] sm:$0xff] %v355
                %v357 = vld [vmem:[%s315 + $0x140] sm:$0xff]
                %358 = vst [vmem:[%s316 + $0xa0] sm:$0xff] %v357
                %v359 = vld [vmem:[%s315 + $0x148] sm:$0xff]
                %360 = vst [vmem:[%s316 + $0xa8] sm:$0xff] %v359
                %v361 = vld [vmem:[%s315 + $0x150] sm:$0xff]
                %362 = vst [vmem:[%s316 + $0xb0] sm:$0xff] %v361
                %v363 = vld [vmem:[%s315 + $0x158] sm:$0xff]
                %364 = vst [vmem:[%s316 + $0xb8] sm:$0xff] %v363
                %v365 = vld [vmem:[%s315 + $0x180] sm:$0xff]
                %366 = vst [vmem:[%s316 + $0xc0] sm:$0xff] %v365
                %v367 = vld [vmem:[%s315 + $0x188] sm:$0xff]
                %368 = vst [vmem:[%s316 + $0xc8] sm:$0xff] %v367
                %v369 = vld [vmem:[%s315 + $0x190] sm:$0xff]
                %370 = vst [vmem:[%s316 + $0xd0] sm:$0xff] %v369
                %v371 = vld [vmem:[%s315 + $0x198] sm:$0xff]
                %372 = vst [vmem:[%s316 + $0xd8] sm:$0xff] %v371
                %v373 = vld [vmem:[%s315 + $0x1c0] sm:$0xff]
                %374 = vst [vmem:[%s316 + $0xe0] sm:$0xff] %v373
                %v375 = vld [vmem:[%s315 + $0x1c8] sm:$0xff]
                %376 = vst [vmem:[%s316 + $0xe8] sm:$0xff] %v375
                %v377 = vld [vmem:[%s315 + $0x1d0] sm:$0xff]
                %378 = vst [vmem:[%s316 + $0xf0] sm:$0xff] %v377
                %v379 = vld [vmem:[%s315 + $0x1d8] sm:$0xff]
                %380 = vst [vmem:[%s316 + $0xf8] sm:$0xff] %v379
              $region53: #{tpu_custom_call.1} parent=47 // loop_footer
                %s314 = sadd.s32 1, %s310
              $region54: #{tpu_custom_call.1} parent=47 // loop_footer_branch
                %309 = sbr.rel target = $region50
              $region55: #{tpu_custom_call.1} parent=47 // loop_exit
                _
            $region48: #{tpu_custom_call.1} parent=43 // pred_fallthru
              _
            // Predicated region
            $region56: #{tpu_custom_call.1} parent=43 // pred_check
              _
            $region57: #{tpu_custom_call.1} parent=43 // pred_check_branch
              %382 = sbr.rel target = $region59
            $region58: #{tpu_custom_call.1} parent=43 // pred_region
              _
            $region59: #{tpu_custom_call.1} parent=43 // pred_fallthru
              _
          $region44: #{tpu_custom_call.1} parent=39 // pred_fallthru
            _
          %383 = vnop
        $region40: #{tpu_custom_call.1} parent=35 // pred_fallthru
          _
        // Predicated region
        $region60: #{tpu_custom_call.1} parent=35 // pred_check
          %p384 = pneg %p113
        $region61: #{tpu_custom_call.1} parent=35 // pred_check_branch
          %386 = sbr.rel (%p384) target = $region63
        $region62: #{tpu_custom_call.1} parent=35 // pred_region
          %s387 = smul.u32 32, %s33
          %p388 = scmp.lt.s32.totalorder %s387, 127
          %s389 = scalar_select %p388, %s387, 127
          %s390 = smul.addr %s389, 8
          %s391 = scalar_lea.vmem %s4, %s390
          %s392 = smul.u32 32, %s33
        $region63: #{tpu_custom_call.1} parent=35 // pred_fallthru
          _
        // Predicated region
        $region64: #{tpu_custom_call.1} parent=35 // pred_check
          %p393 = pneg %p139
        $region65: #{tpu_custom_call.1} parent=35 // pred_check_branch
          %395 = sbr.rel (%p393) target = $region67
        $region66: #{tpu_custom_call.1} parent=35 // pred_region
          %s396 = smul.u32 32, %s33
          %p397 = scmp.lt.s32.totalorder %s396, 127
          %s398 = scalar_select %p397, %s396, 127
          %s399 = smul.addr %s398, 8
          %s400 = scalar_lea.vmem %s5, %s399
          %s401 = smul.u32 32, %s33
        $region67: #{tpu_custom_call.1} parent=35 // pred_fallthru
          _
      $region36: #{tpu_custom_call.1} parent=5 // pred_fallthru
        _
      %p402 = scmp.le.s32.totalorder 1, %s26
      %p403 = scmp.lt.s32.totalorder %s26, 9
      %p404 = pnand %p402, %p403
      %p405 = pneg %p404
      // Predicated region
      $region68: #{tpu_custom_call.1} parent=5 // pred_check
        _
      $region69: #{tpu_custom_call.1} parent=5 // pred_check_branch
        %407 = sbr.rel (%p404) target = $region71
      $region70: #{tpu_custom_call.1} parent=5 // pred_region
        %s408 = ssub.s32 %s26, 1
        %s409 = sand.u32 %s59, 1
        %s410 = sand.u32 %s59, 1
        %s411 = smul.addr %s410, 256
        %s412 = scalar_lea.vmem [#allocation6], %s411
        // Predicated region
        $region72: #{tpu_custom_call.1} parent=70 // pred_check
          %p413 = pneg %p72
        $region73: #{tpu_custom_call.1} parent=70 // pred_check_branch
          %415 = sbr.rel (%p413) target = $region75
        $region74: #{tpu_custom_call.1} parent=70 // pred_region
          _
        $region75: #{tpu_custom_call.1} parent=70 // pred_fallthru
          _
        %s416 = sand.u32 %s59, 1
        %s417 = sand.u32 %s59, 1
        %s418 = smul.addr %s417, 256
        %s419 = scalar_lea.vmem [#allocation6], %s418
        %p420 = pneg %p72
        %p421 = pneg %p69
        %p422 = pneg %p93
        %p423 = pneg %p90
        %s424 = smul.u32 32, %s35
        %p425 = scmp.lt.s32.totalorder %s424, 127
        %s426 = scalar_select %p425, %s424, 127
        %s427 = smul.addr %s426, 8
        %s428 = scalar_lea.vmem %s4, %s427
        %p429 = pneg %p119
        %p430 = pneg %p116
        %s431 = smul.u32 32, %s35
        %p432 = scmp.lt.s32.totalorder %s431, 127
        %s433 = scalar_select %p432, %s431, 127
        %s434 = smul.addr %s433, 8
        %s435 = scalar_lea.vmem %s5, %s434
        %p436 = pneg %p145
        %p437 = pneg %p142
        %p438 = pneg %p166
        %p439 = pneg %p163
        %p440 = pneg %p187
        %p441 = pneg %p184
        %p442 = pneg %p208
        %p443 = pneg %p205
        %p444 = pneg %p229
        %p445 = pneg %p226
        %p446 = pneg %p255
        %p447 = pneg %p252
        %s448 = smul.u32 32, %s35
        %p449 = scmp.lt.s32.totalorder %s448, 127
        %s450 = scalar_select %p449, %s448, 127
        %s451 = smul.addr %s450, 8
        %s452 = scalar_lea.vmem %s10, %s451
        %s453 = smul.u32 %s35, 2
        %s454 = sadd.s32 %s453, %s36
        %s455 = sld [smem:[#allocation4 + %s454]]
        %s456 = smul.u32 8, %s35
        %s457 = smul.u32 4, %s455
        %s458 = smul.u32 32, %s35
        %p459 = scmp.lt.s32.totalorder %s458, 127
        %s460 = scalar_select %p459, %s458, 127
        %s461 = smul.addr %s460, 8
        %s462 = scalar_lea.vmem %s4, %s461
        %s463 = smul.u32 32, %s35
        %s464 = smul.u32 32, %s35
        %p465 = scmp.lt.s32.totalorder %s464, 127
        %s466 = scalar_select %p465, %s464, 127
        %s467 = smul.addr %s466, 8
        %s468 = scalar_lea.vmem %s5, %s467
        %s469 = smul.u32 32, %s35
        %s470 = smul.u32 32, %s35
        %p471 = scmp.lt.s32.totalorder %s470, 127
        %s472 = scalar_select %p471, %s470, 127
        %s473 = smul.addr %s472, 8
        %s474 = scalar_lea.vmem %s10, %s473
        %s475 = smul.u32 32, %s35
        %p477 = scmp.eq.s32.totalorder %s36, 0
        // Predicated region
        $region76: #{tpu_custom_call.1} parent=70 // pred_check
          %p478 = pneg %p477
        $region77: #{tpu_custom_call.1} parent=70 // pred_check_branch
          %480 = sbr.rel (%p478) target = $region79
        $region78: #{tpu_custom_call.1} parent=70 // pred_region
          %vm481 = vcmask 64512
          %482 = vst.msk [vmem:[#allocation2] sm:$0xff] %vm481, 0.0
          %483 = vst.msk [vmem:[#allocation2 + $0x8] sm:$0xff] %vm481, 0.0
          %484 = vst.msk [vmem:[#allocation2 + $0x10] sm:$0xff] %vm481, 0.0
          %485 = vst.msk [vmem:[#allocation2 + $0x18] sm:$0xff] %vm481, 0.0
          %486 = vst.msk [vmem:[#allocation2 + $0x20] sm:$0xff] %vm481, 0.0
          %487 = vst.msk [vmem:[#allocation2 + $0x28] sm:$0xff] %vm481, 0.0
          %488 = vst.msk [vmem:[#allocation2 + $0x30] sm:$0xff] %vm481, 0.0
          %489 = vst.msk [vmem:[#allocation2 + $0x38] sm:$0xff] %vm481, 0.0
          %490 = vst.msk [vmem:[#allocation2 + $0x40] sm:$0xff] %vm481, 0.0
          %491 = vst.msk [vmem:[#allocation2 + $0x48] sm:$0xff] %vm481, 0.0
          %492 = vst.msk [vmem:[#allocation2 + $0x50] sm:$0xff] %vm481, 0.0
          %493 = vst.msk [vmem:[#allocation2 + $0x58] sm:$0xff] %vm481, 0.0
          %494 = vst.msk [vmem:[#allocation2 + $0x60] sm:$0xff] %vm481, 0.0
          %495 = vst.msk [vmem:[#allocation2 + $0x68] sm:$0xff] %vm481, 0.0
          %496 = vst.msk [vmem:[#allocation2 + $0x70] sm:$0xff] %vm481, 0.0
          %497 = vst.msk [vmem:[#allocation2 + $0x78] sm:$0xff] %vm481, 0.0
          %498 = vst.msk [vmem:[#allocation2 + $0x80] sm:$0xff] %vm481, 0.0
          %499 = vst.msk [vmem:[#allocation2 + $0x88] sm:$0xff] %vm481, 0.0
          %500 = vst.msk [vmem:[#allocation2 + $0x90] sm:$0xff] %vm481, 0.0
          %501 = vst.msk [vmem:[#allocation2 + $0x98] sm:$0xff] %vm481, 0.0
          %502 = vst.msk [vmem:[#allocation2 + $0xa0] sm:$0xff] %vm481, 0.0
          %503 = vst.msk [vmem:[#allocation2 + $0xa8] sm:$0xff] %vm481, 0.0
          %504 = vst.msk [vmem:[#allocation2 + $0xb0] sm:$0xff] %vm481, 0.0
          %505 = vst.msk [vmem:[#allocation2 + $0xb8] sm:$0xff] %vm481, 0.0
          %506 = vst.msk [vmem:[#allocation2 + $0xc0] sm:$0xff] %vm481, 0.0
          %507 = vst.msk [vmem:[#allocation2 + $0xc8] sm:$0xff] %vm481, 0.0
          %508 = vst.msk [vmem:[#allocation2 + $0xd0] sm:$0xff] %vm481, 0.0
          %509 = vst.msk [vmem:[#allocation2 + $0xd8] sm:$0xff] %vm481, 0.0
          %510 = vst.msk [vmem:[#allocation2 + $0xe0] sm:$0xff] %vm481, 0.0
          %511 = vst.msk [vmem:[#allocation2 + $0xe8] sm:$0xff] %vm481, 0.0
          %512 = vst.msk [vmem:[#allocation2 + $0xf0] sm:$0xff] %vm481, 0.0
          %513 = vst.msk [vmem:[#allocation2 + $0xf8] sm:$0xff] %vm481, 0.0
        $region79: #{tpu_custom_call.1} parent=70 // pred_fallthru
          _
        %s514 = sld [smem:[#allocation5 + %s35]]
        %p515 = scmp.lt.s32.totalorder %s36, %s514
        // Predicated region
        $region80: #{tpu_custom_call.1} parent=70 // pred_check
          %p516 = pneg %p515
        $region81: #{tpu_custom_call.1} parent=70 // pred_check_branch
          %518 = sbr.rel (%p516) target = $region83
        $region82: #{tpu_custom_call.1} parent=70 // pred_region
          %s519 = smul.u32 %s35, 2
          %s520 = sadd.s32 %s519, %s36
          %s521 = sld [smem:[#allocation4 + %s520]]
          %s522 = smul.u32 %s521, 512
          %s523 = sshra.s32 %s522, 3
          %s524 = sand.u32 %s522, 7
          %s525 = smul.addr %s523, 4
          %s526 = scalar_lea.vmem %s3, %s525
          %v527 = vld [vmem:[%s526] sm:$0xf]
          %v528 = vld [vmem:[%s526 + $0x4] sm:$0xf]
          %v529 = vld [vmem:[%s526 + $0x8] sm:$0xf]
          %v530 = vld [vmem:[%s526 + $0xc] sm:$0xf]
          %v531 = vld [vmem:[%s526 + $0x10] sm:$0xf]
          %v532 = vld [vmem:[%s526 + $0x14] sm:$0xf]
          %v533 = vld [vmem:[%s526 + $0x18] sm:$0xf]
          %v534 = vld [vmem:[%s526 + $0x1c] sm:$0xf]
          %v535 = vld [vmem:[%s526 + $0x20] sm:$0xf]
          %v536 = vld [vmem:[%s526 + $0x24] sm:$0xf]
          %v537 = vld [vmem:[%s526 + $0x28] sm:$0xf]
          %v538 = vld [vmem:[%s526 + $0x2c] sm:$0xf]
          %v539 = vld [vmem:[%s526 + $0x30] sm:$0xf]
          %v540 = vld [vmem:[%s526 + $0x34] sm:$0xf]
          %v541 = vld [vmem:[%s526 + $0x38] sm:$0xf]
          %v542 = vld [vmem:[%s526 + $0x3c] sm:$0xf]
          %v543 = vld [vmem:[%s526 + $0x40] sm:$0xf]
          %v544 = vld [vmem:[%s526 + $0x44] sm:$0xf]
          %v545 = vld [vmem:[%s526 + $0x48] sm:$0xf]
          %v546 = vld [vmem:[%s526 + $0x4c] sm:$0xf]
          %v547 = vld [vmem:[%s526 + $0x50] sm:$0xf]
          %v548 = vld [vmem:[%s526 + $0x54] sm:$0xf]
          %v549 = vld [vmem:[%s526 + $0x58] sm:$0xf]
          %v550 = vld [vmem:[%s526 + $0x5c] sm:$0xf]
          %v551 = vld [vmem:[%s526 + $0x60] sm:$0xf]
          %v552 = vld [vmem:[%s526 + $0x64] sm:$0xf]
          %v553 = vld [vmem:[%s526 + $0x68] sm:$0xf]
          %v554 = vld [vmem:[%s526 + $0x6c] sm:$0xf]
          %v555 = vld [vmem:[%s526 + $0x70] sm:$0xf]
          %v556 = vld [vmem:[%s526 + $0x74] sm:$0xf]
          %v557 = vld [vmem:[%s526 + $0x78] sm:$0xf]
          %v558 = vld [vmem:[%s526 + $0x7c] sm:$0xf]
          %v559 = vld [vmem:[%s526 + $0x80] sm:$0xf]
          %v560 = vld [vmem:[%s526 + $0x84] sm:$0xf]
          %v561 = vld [vmem:[%s526 + $0x88] sm:$0xf]
          %v562 = vld [vmem:[%s526 + $0x8c] sm:$0xf]
          %v563 = vld [vmem:[%s526 + $0x90] sm:$0xf]
          %v564 = vld [vmem:[%s526 + $0x94] sm:$0xf]
          %v565 = vld [vmem:[%s526 + $0x98] sm:$0xf]
          %v566 = vld [vmem:[%s526 + $0x9c] sm:$0xf]
          %v567 = vld [vmem:[%s526 + $0xa0] sm:$0xf]
          %v568 = vld [vmem:[%s526 + $0xa4] sm:$0xf]
          %v569 = vld [vmem:[%s526 + $0xa8] sm:$0xf]
          %v570 = vld [vmem:[%s526 + $0xac] sm:$0xf]
          %v571 = vld [vmem:[%s526 + $0xb0] sm:$0xf]
          %v572 = vld [vmem:[%s526 + $0xb4] sm:$0xf]
          %v573 = vld [vmem:[%s526 + $0xb8] sm:$0xf]
          %v574 = vld [vmem:[%s526 + $0xbc] sm:$0xf]
          %v575 = vld [vmem:[%s526 + $0xc0] sm:$0xf]
          %v576 = vld [vmem:[%s526 + $0xc4] sm:$0xf]
          %v577 = vld [vmem:[%s526 + $0xc8] sm:$0xf]
          %v578 = vld [vmem:[%s526 + $0xcc] sm:$0xf]
          %v579 = vld [vmem:[%s526 + $0xd0] sm:$0xf]
          %v580 = vld [vmem:[%s526 + $0xd4] sm:$0xf]
          %v581 = vld [vmem:[%s526 + $0xd8] sm:$0xf]
          %v582 = vld [vmem:[%s526 + $0xdc] sm:$0xf]
          %v583 = vld [vmem:[%s526 + $0xe0] sm:$0xf]
          %v584 = vld [vmem:[%s526 + $0xe4] sm:$0xf]
          %v585 = vld [vmem:[%s526 + $0xe8] sm:$0xf]
          %v586 = vld [vmem:[%s526 + $0xec] sm:$0xf]
          %v587 = vld [vmem:[%s526 + $0xf0] sm:$0xf]
          %v588 = vld [vmem:[%s526 + $0xf4] sm:$0xf]
          %v589 = vld [vmem:[%s526 + $0xf8] sm:$0xf]
          %v590 = vld [vmem:[%s526 + $0xfc] sm:$0xf]
          %v591 = vld [vmem:[#allocation2] sm:$0xff]
          %v592 = vld [vmem:[#allocation2 + $0x8] sm:$0xff]
          %v593 = vld [vmem:[#allocation2 + $0x10] sm:$0xff]
          %v594 = vld [vmem:[#allocation2 + $0x18] sm:$0xff]
          %v595 = vld [vmem:[#allocation2 + $0x20] sm:$0xff]
          %v596 = vld [vmem:[#allocation2 + $0x28] sm:$0xff]
          %v597 = vld [vmem:[#allocation2 + $0x30] sm:$0xff]
          %v598 = vld [vmem:[#allocation2 + $0x38] sm:$0xff]
          %v599 = vld [vmem:[#allocation2 + $0x40] sm:$0xff]
          %v600 = vld [vmem:[#allocation2 + $0x48] sm:$0xff]
          %v601 = vld [vmem:[#allocation2 + $0x50] sm:$0xff]
          %v602 = vld [vmem:[#allocation2 + $0x58] sm:$0xff]
          %v603 = vld [vmem:[#allocation2 + $0x60] sm:$0xff]
          %v604 = vld [vmem:[#allocation2 + $0x68] sm:$0xff]
          %v605 = vld [vmem:[#allocation2 + $0x70] sm:$0xff]
          %v606 = vld [vmem:[#allocation2 + $0x78] sm:$0xff]
          %v607 = vld [vmem:[#allocation2 + $0x80] sm:$0xff]
          %v608 = vld [vmem:[#allocation2 + $0x88] sm:$0xff]
          %v609 = vld [vmem:[#allocation2 + $0x90] sm:$0xff]
          %v610 = vld [vmem:[#allocation2 + $0x98] sm:$0xff]
          %v611 = vld [vmem:[#allocation2 + $0xa0] sm:$0xff]
          %v612 = vld [vmem:[#allocation2 + $0xa8] sm:$0xff]
          %v613 = vld [vmem:[#allocation2 + $0xb0] sm:$0xff]
          %v614 = vld [vmem:[#allocation2 + $0xb8] sm:$0xff]
          %v615 = vld [vmem:[#allocation2 + $0xc0] sm:$0xff]
          %v616 = vld [vmem:[#allocation2 + $0xc8] sm:$0xff]
          %v617 = vld [vmem:[#allocation2 + $0xd0] sm:$0xff]
          %v618 = vld [vmem:[#allocation2 + $0xd8] sm:$0xff]
          %v619 = vld [vmem:[#allocation2 + $0xe0] sm:$0xff]
          %v620 = vld [vmem:[#allocation2 + $0xe8] sm:$0xff]
          %v621 = vld [vmem:[#allocation2 + $0xf0] sm:$0xff]
          %v622 = vld [vmem:[#allocation2 + $0xf8] sm:$0xff]
          %v623 = vld [vmem:[%s412] sm:$0xff]
          %v624 = vld [vmem:[%s412 + $0x8] sm:$0xff]
          %v625 = vld [vmem:[%s412 + $0x10] sm:$0xff]
          %v626 = vld [vmem:[%s412 + $0x18] sm:$0xff]
          %v627 = vld [vmem:[%s412 + $0x20] sm:$0xff]
          %v628 = vld [vmem:[%s412 + $0x28] sm:$0xff]
          %v629 = vld [vmem:[%s412 + $0x30] sm:$0xff]
          %v630 = vld [vmem:[%s412 + $0x38] sm:$0xff]
          %v631 = vld [vmem:[%s412 + $0x40] sm:$0xff]
          %v632 = vld [vmem:[%s412 + $0x48] sm:$0xff]
          %v633 = vld [vmem:[%s412 + $0x50] sm:$0xff]
          %v634 = vld [vmem:[%s412 + $0x58] sm:$0xff]
          %v635 = vld [vmem:[%s412 + $0x60] sm:$0xff]
          %v636 = vld [vmem:[%s412 + $0x68] sm:$0xff]
          %v637 = vld [vmem:[%s412 + $0x70] sm:$0xff]
          %v638 = vld [vmem:[%s412 + $0x78] sm:$0xff]
          %v639 = vld [vmem:[%s412 + $0x80] sm:$0xff]
          %v640 = vld [vmem:[%s412 + $0x88] sm:$0xff]
          %v641 = vld [vmem:[%s412 + $0x90] sm:$0xff]
          %v642 = vld [vmem:[%s412 + $0x98] sm:$0xff]
          %v643 = vld [vmem:[%s412 + $0xa0] sm:$0xff]
          %v644 = vld [vmem:[%s412 + $0xa8] sm:$0xff]
          %v645 = vld [vmem:[%s412 + $0xb0] sm:$0xff]
          %v646 = vld [vmem:[%s412 + $0xb8] sm:$0xff]
          %v647 = vld [vmem:[%s412 + $0xc0] sm:$0xff]
          %v648 = vld [vmem:[%s412 + $0xc8] sm:$0xff]
          %v649 = vld [vmem:[%s412 + $0xd0] sm:$0xff]
          %v650 = vld [vmem:[%s412 + $0xd8] sm:$0xff]
          %v651 = vld [vmem:[%s412 + $0xe0] sm:$0xff]
          %v652 = vld [vmem:[%s412 + $0xe8] sm:$0xff]
          %v653 = vld [vmem:[%s412 + $0xf0] sm:$0xff]
          %v654 = vld [vmem:[%s412 + $0xf8] sm:$0xff]
          %v655 = vunpack.c.l.s8.bf16 %v623
          %v656 = vunpack.c.l.s8.bf16 %v624
          %v657 = vunpack.c.l.s8.bf16 %v625
          %v658 = vunpack.c.l.s8.bf16 %v626
          %v659 = vunpack.c.h.s8.bf16 %v623
          %v660 = vunpack.c.h.s8.bf16 %v624
          %v661 = vunpack.c.h.s8.bf16 %v625
          %v662 = vunpack.c.h.s8.bf16 %v626
          %v663 = vunpack.c.l.s8.bf16 %v627
          %v664 = vunpack.c.l.s8.bf16 %v628
          %v665 = vunpack.c.l.s8.bf16 %v629
          %v666 = vunpack.c.l.s8.bf16 %v630
          %v667 = vunpack.c.h.s8.bf16 %v627
          %v668 = vunpack.c.h.s8.bf16 %v628
          %v669 = vunpack.c.h.s8.bf16 %v629
          %v670 = vunpack.c.h.s8.bf16 %v630
          %v671 = vunpack.c.l.s8.bf16 %v631
          %v672 = vunpack.c.l.s8.bf16 %v632
          %v673 = vunpack.c.l.s8.bf16 %v633
          %v674 = vunpack.c.l.s8.bf16 %v634
          %v675 = vunpack.c.h.s8.bf16 %v631
          %v676 = vunpack.c.h.s8.bf16 %v632
          %v677 = vunpack.c.h.s8.bf16 %v633
          %v678 = vunpack.c.h.s8.bf16 %v634
          %v679 = vunpack.c.l.s8.bf16 %v635
          %v680 = vunpack.c.l.s8.bf16 %v636
          %v681 = vunpack.c.l.s8.bf16 %v637
          %v682 = vunpack.c.l.s8.bf16 %v638
          %v683 = vunpack.c.h.s8.bf16 %v635
          %v684 = vunpack.c.h.s8.bf16 %v636
          %v685 = vunpack.c.h.s8.bf16 %v637
          %v686 = vunpack.c.h.s8.bf16 %v638
          %v687 = vunpack.c.l.s8.bf16 %v639
          %v688 = vunpack.c.l.s8.bf16 %v640
          %v689 = vunpack.c.l.s8.bf16 %v641
          %v690 = vunpack.c.l.s8.bf16 %v642
          %v691 = vunpack.c.h.s8.bf16 %v639
          %v692 = vunpack.c.h.s8.bf16 %v640
          %v693 = vunpack.c.h.s8.bf16 %v641
          %v694 = vunpack.c.h.s8.bf16 %v642
          %v695 = vunpack.c.l.s8.bf16 %v643
          %v696 = vunpack.c.l.s8.bf16 %v644
          %v697 = vunpack.c.l.s8.bf16 %v645
          %v698 = vunpack.c.l.s8.bf16 %v646
          %v699 = vunpack.c.h.s8.bf16 %v643
          %v700 = vunpack.c.h.s8.bf16 %v644
          %v701 = vunpack.c.h.s8.bf16 %v645
          %v702 = vunpack.c.h.s8.bf16 %v646
          %v703 = vunpack.c.l.s8.bf16 %v647
          %v704 = vunpack.c.l.s8.bf16 %v648
          %v705 = vunpack.c.l.s8.bf16 %v649
          %v706 = vunpack.c.l.s8.bf16 %v650
          %v707 = vunpack.c.h.s8.bf16 %v647
          %v708 = vunpack.c.h.s8.bf16 %v648
          %v709 = vunpack.c.h.s8.bf16 %v649
          %v710 = vunpack.c.h.s8.bf16 %v650
          %v711 = vunpack.c.l.s8.bf16 %v651
          %v712 = vunpack.c.l.s8.bf16 %v652
          %v713 = vunpack.c.l.s8.bf16 %v653
          %v714 = vunpack.c.l.s8.bf16 %v654
          %v715 = vunpack.c.h.s8.bf16 %v651
          %v716 = vunpack.c.h.s8.bf16 %v652
          %v717 = vunpack.c.h.s8.bf16 %v653
          %v718 = vunpack.c.h.s8.bf16 %v654
          %v783 = vunpack.c.l.b16 %v527
          %v784 = vunpack.c.l.b16 %v528
          %v785 = vunpack.c.l.b16 %v529
          %v786 = vunpack.c.l.b16 %v530
          %v787 = vunpack.c.l.b16 %v531
          %v788 = vunpack.c.l.b16 %v532
          %v789 = vunpack.c.l.b16 %v533
          %v790 = vunpack.c.l.b16 %v534
          %v791 = vunpack.c.l.b16 %v535
          %v792 = vunpack.c.l.b16 %v536
          %v793 = vunpack.c.l.b16 %v537
          %v794 = vunpack.c.l.b16 %v538
          %v795 = vunpack.c.l.b16 %v539
          %v796 = vunpack.c.l.b16 %v540
          %v797 = vunpack.c.l.b16 %v541
          %v798 = vunpack.c.l.b16 %v542
          %v799 = vunpack.c.l.b16 %v543
          %v800 = vunpack.c.l.b16 %v544
          %v801 = vunpack.c.l.b16 %v545
          %v802 = vunpack.c.l.b16 %v546
          %v803 = vunpack.c.l.b16 %v547
          %v804 = vunpack.c.l.b16 %v548
          %v805 = vunpack.c.l.b16 %v549
          %v806 = vunpack.c.l.b16 %v550
          %v807 = vunpack.c.l.b16 %v551
          %v808 = vunpack.c.l.b16 %v552
          %v809 = vunpack.c.l.b16 %v553
          %v810 = vunpack.c.l.b16 %v554
          %v811 = vunpack.c.l.b16 %v555
          %v812 = vunpack.c.l.b16 %v556
          %v813 = vunpack.c.l.b16 %v557
          %v814 = vunpack.c.l.b16 %v558
          %v815 = vunpack.c.l.b16 %v559
          %v816 = vunpack.c.l.b16 %v560
          %v817 = vunpack.c.l.b16 %v561
          %v818 = vunpack.c.l.b16 %v562
          %v819 = vunpack.c.l.b16 %v563
          %v820 = vunpack.c.l.b16 %v564
          %v821 = vunpack.c.l.b16 %v565
          %v822 = vunpack.c.l.b16 %v566
          %v823 = vunpack.c.l.b16 %v567
          %v824 = vunpack.c.l.b16 %v568
          %v825 = vunpack.c.l.b16 %v569
          %v826 = vunpack.c.l.b16 %v570
          %v827 = vunpack.c.l.b16 %v571
          %v828 = vunpack.c.l.b16 %v572
          %v829 = vunpack.c.l.b16 %v573
          %v830 = vunpack.c.l.b16 %v574
          %v831 = vunpack.c.l.b16 %v575
          %v832 = vunpack.c.l.b16 %v576
          %v833 = vunpack.c.l.b16 %v577
          %v834 = vunpack.c.l.b16 %v578
          %v835 = vunpack.c.l.b16 %v579
          %v836 = vunpack.c.l.b16 %v580
          %v837 = vunpack.c.l.b16 %v581
          %v838 = vunpack.c.l.b16 %v582
          %v839 = vunpack.c.l.b16 %v583
          %v840 = vunpack.c.l.b16 %v584
          %v841 = vunpack.c.l.b16 %v585
          %v842 = vunpack.c.l.b16 %v586
          %v843 = vunpack.c.l.b16 %v587
          %v844 = vunpack.c.l.b16 %v588
          %v845 = vunpack.c.l.b16 %v589
          %v846 = vunpack.c.l.b16 %v590
          %v847 = vpack.c.b16 %v784, %v783
          %v848 = vpack.c.b16 %v786, %v785
          %v849 = vpack.c.b16 %v788, %v787
          %v850 = vpack.c.b16 %v790, %v789
          %v851 = vpack.c.b16 %v792, %v791
          %v852 = vpack.c.b16 %v794, %v793
          %v853 = vpack.c.b16 %v796, %v795
          %v854 = vpack.c.b16 %v798, %v797
          %v855 = vpack.c.b16 %v800, %v799
          %v856 = vpack.c.b16 %v802, %v801
          %v857 = vpack.c.b16 %v804, %v803
          %v858 = vpack.c.b16 %v806, %v805
          %v859 = vpack.c.b16 %v808, %v807
          %v860 = vpack.c.b16 %v810, %v809
          %v861 = vpack.c.b16 %v812, %v811
          %v862 = vpack.c.b16 %v814, %v813
          %v863 = vpack.c.b16 %v816, %v815
          %v864 = vpack.c.b16 %v818, %v817
          %v865 = vpack.c.b16 %v820, %v819
          %v866 = vpack.c.b16 %v822, %v821
          %v867 = vpack.c.b16 %v824, %v823
          %v868 = vpack.c.b16 %v826, %v825
          %v869 = vpack.c.b16 %v828, %v827
          %v870 = vpack.c.b16 %v830, %v829
          %v871 = vpack.c.b16 %v832, %v831
          %v872 = vpack.c.b16 %v834, %v833
          %v873 = vpack.c.b16 %v836, %v835
          %v874 = vpack.c.b16 %v838, %v837
          %v875 = vpack.c.b16 %v840, %v839
          %v876 = vpack.c.b16 %v842, %v841
          %v877 = vpack.c.b16 %v844, %v843
          %v878 = vpack.c.b16 %v846, %v845
          %911 = vmatprep.subr.bf16.mxu0 0
          %912 = vmatpush1.bf16.msra.mxu0 %v847
          %913 = vmatprep.subr.bf16.mxu0 0
          %914 = vmatpush1.bf16.msra.mxu0 %v848
          %915 = vmatprep.subr.bf16.mxu0 0
          %916 = vmatpush1.bf16.msra.mxu0 %v849
          %917 = vmatprep.subr.bf16.mxu0 0
          %918 = vmatpush1.bf16.msra.mxu0 %v850
          %919 = vmatprep.subr.bf16.mxu0 0
          %920 = vmatpush1.bf16.msra.mxu0 %v851
          %921 = vmatprep.subr.bf16.mxu0 0
          %922 = vmatpush1.bf16.msra.mxu0 %v852
          %923 = vmatprep.subr.bf16.mxu0 0
          %924 = vmatpush1.bf16.msra.mxu0 %v853
          %925 = vmatprep.subr.bf16.mxu0 0
          %926 = vmatpush1.bf16.msra.mxu0 %v854
          %927 = vmatprep.subr.bf16.mxu0 0
          %928 = vmatpush1.bf16.msra.mxu0 %v855
          %929 = vmatprep.subr.bf16.mxu0 0
          %930 = vmatpush1.bf16.msra.mxu0 %v856
          %931 = vmatprep.subr.bf16.mxu0 0
          %932 = vmatpush1.bf16.msra.mxu0 %v857
          %933 = vmatprep.subr.bf16.mxu0 0
          %934 = vmatpush1.bf16.msra.mxu0 %v858
          %935 = vmatprep.subr.bf16.mxu0 0
          %936 = vmatpush1.bf16.msra.mxu0 %v859
          %937 = vmatprep.subr.bf16.mxu0 0
          %938 = vmatpush1.bf16.msra.mxu0 %v860
          %939 = vmatprep.subr.bf16.mxu0 0
          %940 = vmatpush1.bf16.msra.mxu0 %v861
          %941 = vmatprep.subr.bf16.mxu0 0
          %942 = vmatpush1.bf16.msra.mxu0 %v862
          %943 = vmatprep.mubr.bf16.mxu0 %v656
          %944 = vmatmul.mubr.bf16.gmra.mrb[0].mxu0 %v655
          %v945 = vpop.f32.mrb[0].mxu0
          %v946 = vadd.f32 0.0, %v945
          %v947 = vpop.f32.mrb[0].mxu0
          %v948 = vpop.f32.mrb[0].mxu0
          %v949 = vadd.f32 0.0, %v948
          %v950 = vpop.f32.mrb[0].mxu0
          %951 = vmatprep.mubr.bf16.mxu0 %v660
          %952 = vmatmul.mubr.bf16.gmra.mrb[0].mxu0 %v659
          %v953 = vpop.f32.mrb[0].mxu0
          %v954 = vadd.f32 0.0, %v953
          %v955 = vpop.f32.mrb[0].mxu0
          %v956 = vpop.f32.mrb[0].mxu0
          %v957 = vadd.f32 0.0, %v956
          %v958 = vpop.f32.mrb[0].mxu0
          %959 = vmatprep.mubr.bf16.mxu0 %v664
          %960 = vmatmul.mubr.bf16.gmra.mrb[0].mxu0 %v663
          %v961 = vpop.f32.mrb[0].mxu0
          %v962 = vadd.f32 0.0, %v961
          %v963 = vpop.f32.mrb[0].mxu0
          %v964 = vpop.f32.mrb[0].mxu0
          %v965 = vadd.f32 0.0, %v964
          %v966 = vpop.f32.mrb[0].mxu0
          %967 = vmatprep.mubr.bf16.mxu0 %v668
          %968 = vmatmul.mubr.bf16.gmra.mrb[0].mxu0 %v667
          %v969 = vpop.f32.mrb[0].mxu0
          %v970 = vadd.f32 0.0, %v969
          %v971 = vpop.f32.mrb[0].mxu0
          %v972 = vpop.f32.mrb[0].mxu0
          %v973 = vadd.f32 0.0, %v972
          %v974 = vpop.f32.mrb[0].mxu0
          %975 = vmatprep.mubr.bf16.mxu0 %v672
          %976 = vmatmul.mubr.bf16.gmra.mrb[0].mxu0 %v671
          %v977 = vpop.f32.mrb[0].mxu0
          %v978 = vadd.f32 0.0, %v977
          %v979 = vpop.f32.mrb[0].mxu0
          %v980 = vpop.f32.mrb[0].mxu0
          %v981 = vadd.f32 0.0, %v980
          %v982 = vpop.f32.mrb[0].mxu0
          %983 = vmatprep.mubr.bf16.mxu0 %v676
          %984 = vmatmul.mubr.bf16.gmra.mrb[0].mxu0 %v675
          %v985 = vpop.f32.mrb[0].mxu0
          %v986 = vadd.f32 0.0, %v985
          %v987 = vpop.f32.mrb[0].mxu0
          %v988 = vpop.f32.mrb[0].mxu0
          %v989 = vadd.f32 0.0, %v988
          %v990 = vpop.f32.mrb[0].mxu0
          %991 = vmatprep.mubr.bf16.mxu0 %v680
          %992 = vmatmul.mubr.bf16.gmra.mrb[0].mxu0 %v679
          %v993 = vpop.f32.mrb[0].mxu0
          %v994 = vadd.f32 0.0, %v993
          %v995 = vpop.f32.mrb[0].mxu0
          %v996 = vpop.f32.mrb[0].mxu0
          %v997 = vadd.f32 0.0, %v996
          %v998 = vpop.f32.mrb[0].mxu0
          %999 = vmatprep.mubr.bf16.mxu0 %v684
          %1000 = vmatmul.mubr.bf16.gmra.mrb[0].mxu0 %v683
          %v1001 = vpop.f32.mrb[0].mxu0
          %v1002 = vadd.f32 0.0, %v1001
          %v1003 = vpop.f32.mrb[0].mxu0
          %v1004 = vpop.f32.mrb[0].mxu0
          %v1005 = vadd.f32 0.0, %v1004
          %v1006 = vpop.f32.mrb[0].mxu0
          %1007 = vmatprep.mubr.bf16.mxu0 %v688
          %1008 = vmatmul.mubr.bf16.gmra.mrb[0].mxu0 %v687
          %v1009 = vpop.f32.mrb[0].mxu0
          %v1010 = vadd.f32 0.0, %v1009
          %v1011 = vpop.f32.mrb[0].mxu0
          %v1012 = vpop.f32.mrb[0].mxu0
          %v1013 = vadd.f32 0.0, %v1012
          %v1014 = vpop.f32.mrb[0].mxu0
          %1015 = vmatprep.mubr.bf16.mxu0 %v692
          %1016 = vmatmul.mubr.bf16.gmra.mrb[0].mxu0 %v691
          %v1017 = vpop.f32.mrb[0].mxu0
          %v1018 = vadd.f32 0.0, %v1017
          %v1019 = vpop.f32.mrb[0].mxu0
          %v1020 = vpop.f32.mrb[0].mxu0
          %v1021 = vadd.f32 0.0, %v1020
          %v1022 = vpop.f32.mrb[0].mxu0
          %1023 = vmatprep.mubr.bf16.mxu0 %v696
          %1024 = vmatmul.mubr.bf16.gmra.mrb[0].mxu0 %v695
          %v1025 = vpop.f32.mrb[0].mxu0
          %v1026 = vadd.f32 0.0, %v1025
          %v1027 = vpop.f32.mrb[0].mxu0
          %v1028 = vpop.f32.mrb[0].mxu0
          %v1029 = vadd.f32 0.0, %v1028
          %v1030 = vpop.f32.mrb[0].mxu0
          %1031 = vmatprep.mubr.bf16.mxu0 %v700
          %1032 = vmatmul.mubr.bf16.gmra.mrb[0].mxu0 %v699
          %v1033 = vpop.f32.mrb[0].mxu0
          %v1034 = vadd.f32 0.0, %v1033
          %v1035 = vpop.f32.mrb[0].mxu0
          %v1036 = vpop.f32.mrb[0].mxu0
          %v1037 = vadd.f32 0.0, %v1036
          %v1038 = vpop.f32.mrb[0].mxu0
          %1039 = vmatprep.mubr.bf16.mxu0 %v704
          %1040 = vmatmul.mubr.bf16.gmra.mrb[0].mxu0 %v703
          %v1041 = vpop.f32.mrb[0].mxu0
          %v1042 = vadd.f32 0.0, %v1041
          %v1043 = vpop.f32.mrb[0].mxu0
          %v1044 = vpop.f32.mrb[0].mxu0
          %v1045 = vadd.f32 0.0, %v1044
          %v1046 = vpop.f32.mrb[0].mxu0
          %1047 = vmatprep.mubr.bf16.mxu0 %v708
          %1048 = vmatmul.mubr.bf16.gmra.mrb[0].mxu0 %v707
          %v1049 = vpop.f32.mrb[0].mxu0
          %v1050 = vadd.f32 0.0, %v1049
          %v1051 = vpop.f32.mrb[0].mxu0
          %v1052 = vpop.f32.mrb[0].mxu0
          %v1053 = vadd.f32 0.0, %v1052
          %v1054 = vpop.f32.mrb[0].mxu0
          %1055 = vmatprep.mubr.bf16.mxu0 %v712
          %1056 = vmatmul.mubr.bf16.gmra.mrb[0].mxu0 %v711
          %v1057 = vpop.f32.mrb[0].mxu0
          %v1058 = vadd.f32 0.0, %v1057
          %v1059 = vpop.f32.mrb[0].mxu0
          %v1060 = vpop.f32.mrb[0].mxu0
          %v1061 = vadd.f32 0.0, %v1060
          %v1062 = vpop.f32.mrb[0].mxu0
          %1063 = vmatprep.mubr.bf16.mxu0 %v716
          %1064 = vmatmul.mubr.bf16.gmra.mrb[0].mxu0 %v715
          %v1065 = vpop.f32.mrb[0].mxu0
          %v1066 = vadd.f32 0.0, %v1065
          %v1067 = vpop.f32.mrb[0].mxu0
          %v1068 = vpop.f32.mrb[0].mxu0
          %v1069 = vadd.f32 0.0, %v1068
          %v1070 = vpop.f32.mrb[0].mxu0
          %1071 = vdwg.mxu0
          %1072 = vmatprep.subr.bf16.mxu0 0
          %1073 = vmatpush1.bf16.msra.mxu0 %v863
          %1074 = vmatprep.subr.bf16.mxu0 0
          %1075 = vmatpush1.bf16.msra.mxu0 %v864
          %1076 = vmatprep.subr.bf16.mxu0 0
          %1077 = vmatpush1.bf16.msra.mxu0 %v865
          %1078 = vmatprep.subr.bf16.mxu0 0
          %1079 = vmatpush1.bf16.msra.mxu0 %v866
          %1080 = vmatprep.subr.bf16.mxu0 0
          %1081 = vmatpush1.bf16.msra.mxu0 %v867
          %1082 = vmatprep.subr.bf16.mxu0 0
          %1083 = vmatpush1.bf16.msra.mxu0 %v868
          %1084 = vmatprep.subr.bf16.mxu0 0
          %1085 = vmatpush1.bf16.msra.mxu0 %v869
          %1086 = vmatprep.subr.bf16.mxu0 0
          %1087 = vmatpush1.bf16.msra.mxu0 %v870
          %1088 = vmatprep.subr.bf16.mxu0 0
          %1089 = vmatpush1.bf16.msra.mxu0 %v871
          %1090 = vmatprep.subr.bf16.mxu0 0
          %1091 = vmatpush1.bf16.msra.mxu0 %v872
          %1092 = vmatprep.subr.bf16.mxu0 0
          %1093 = vmatpush1.bf16.msra.mxu0 %v873
          %1094 = vmatprep.subr.bf16.mxu0 0
          %1095 = vmatpush1.bf16.msra.mxu0 %v874
          %1096 = vmatprep.subr.bf16.mxu0 0
          %1097 = vmatpush1.bf16.msra.mxu0 %v875
          %1098 = vmatprep.subr.bf16.mxu0 0
          %1099 = vmatpush1.bf16.msra.mxu0 %v876
          %1100 = vmatprep.subr.bf16.mxu0 0
          %1101 = vmatpush1.bf16.msra.mxu0 %v877
          %1102 = vmatprep.subr.bf16.mxu0 0
          %1103 = vmatpush1.bf16.msra.mxu0 %v878
          %1104 = vmatprep.mubr.bf16.mxu0 %v658
          %1105 = vmatmul.mubr.bf16.gmra.mrb[0].mxu0 %v657
          %v1106 = vpop.f32.mrb[0].mxu0
          %v1107 = vadd.f32 %v946, %v1106
          %v1108 = vpop.f32.mrb[0].mxu0
          %v1109 = vpop.f32.mrb[0].mxu0
          %v1110 = vadd.f32 %v949, %v1109
          %v1111 = vpop.f32.mrb[0].mxu0
          %1112 = vmatprep.mubr.bf16.mxu0 %v662
          %1113 = vmatmul.mubr.bf16.gmra.mrb[0].mxu0 %v661
          %v1114 = vpop.f32.mrb[0].mxu0
          %v1115 = vadd.f32 %v954, %v1114
          %v1116 = vpop.f32.mrb[0].mxu0
          %v1117 = vpop.f32.mrb[0].mxu0
          %v1118 = vadd.f32 %v957, %v1117
          %v1119 = vpop.f32.mrb[0].mxu0
          %1120 = vmatprep.mubr.bf16.mxu0 %v666
          %1121 = vmatmul.mubr.bf16.gmra.mrb[0].mxu0 %v665
          %v1122 = vpop.f32.mrb[0].mxu0
          %v1123 = vadd.f32 %v962, %v1122
          %v1124 = vpop.f32.mrb[0].mxu0
          %v1125 = vpop.f32.mrb[0].mxu0
          %v1126 = vadd.f32 %v965, %v1125
          %v1127 = vpop.f32.mrb[0].mxu0
          %1128 = vmatprep.mubr.bf16.mxu0 %v670
          %1129 = vmatmul.mubr.bf16.gmra.mrb[0].mxu0 %v669
          %v1130 = vpop.f32.mrb[0].mxu0
          %v1131 = vadd.f32 %v970, %v1130
          %v1132 = vpop.f32.mrb[0].mxu0
          %v1133 = vpop.f32.mrb[0].mxu0
          %v1134 = vadd.f32 %v973, %v1133
          %v1135 = vpop.f32.mrb[0].mxu0
          %1136 = vmatprep.mubr.bf16.mxu0 %v674
          %1137 = vmatmul.mubr.bf16.gmra.mrb[0].mxu0 %v673
          %v1138 = vpop.f32.mrb[0].mxu0
          %v1139 = vadd.f32 %v978, %v1138
          %v1140 = vpop.f32.mrb[0].mxu0
          %v1141 = vpop.f32.mrb[0].mxu0
          %v1142 = vadd.f32 %v981, %v1141
          %v1143 = vpop.f32.mrb[0].mxu0
          %1144 = vmatprep.mubr.bf16.mxu0 %v678
          %1145 = vmatmul.mubr.bf16.gmra.mrb[0].mxu0 %v677
          %v1146 = vpop.f32.mrb[0].mxu0
          %v1147 = vadd.f32 %v986, %v1146
          %v1148 = vpop.f32.mrb[0].mxu0
          %v1149 = vpop.f32.mrb[0].mxu0
          %v1150 = vadd.f32 %v989, %v1149
          %v1151 = vpop.f32.mrb[0].mxu0
          %1152 = vmatprep.mubr.bf16.mxu0 %v682
          %1153 = vmatmul.mubr.bf16.gmra.mrb[0].mxu0 %v681
          %v1154 = vpop.f32.mrb[0].mxu0
          %v1155 = vadd.f32 %v994, %v1154
          %v1156 = vpop.f32.mrb[0].mxu0
          %v1157 = vpop.f32.mrb[0].mxu0
          %v1158 = vadd.f32 %v997, %v1157
          %v1159 = vpop.f32.mrb[0].mxu0
          %1160 = vmatprep.mubr.bf16.mxu0 %v686
          %1161 = vmatmul.mubr.bf16.gmra.mrb[0].mxu0 %v685
          %v1162 = vpop.f32.mrb[0].mxu0
          %v1163 = vadd.f32 %v1002, %v1162
          %v1164 = vpop.f32.mrb[0].mxu0
          %v1165 = vpop.f32.mrb[0].mxu0
          %v1166 = vadd.f32 %v1005, %v1165
          %v1167 = vpop.f32.mrb[0].mxu0
          %1168 = vmatprep.mubr.bf16.mxu0 %v690
          %1169 = vmatmul.mubr.bf16.gmra.mrb[0].mxu0 %v689
          %v1170 = vpop.f32.mrb[0].mxu0
          %v1171 = vadd.f32 %v1010, %v1170
          %v1172 = vpop.f32.mrb[0].mxu0
          %v1173 = vpop.f32.mrb[0].mxu0
          %v1174 = vadd.f32 %v1013, %v1173
          %v1175 = vpop.f32.mrb[0].mxu0
          %1176 = vmatprep.mubr.bf16.mxu0 %v694
          %1177 = vmatmul.mubr.bf16.gmra.mrb[0].mxu0 %v693
          %v1178 = vpop.f32.mrb[0].mxu0
          %v1179 = vadd.f32 %v1018, %v1178
          %v1180 = vpop.f32.mrb[0].mxu0
          %v1181 = vpop.f32.mrb[0].mxu0
          %v1182 = vadd.f32 %v1021, %v1181
          %v1183 = vpop.f32.mrb[0].mxu0
          %1184 = vmatprep.mubr.bf16.mxu0 %v698
          %1185 = vmatmul.mubr.bf16.gmra.mrb[0].mxu0 %v697
          %v1186 = vpop.f32.mrb[0].mxu0
          %v1187 = vadd.f32 %v1026, %v1186
          %v1188 = vpop.f32.mrb[0].mxu0
          %v1189 = vpop.f32.mrb[0].mxu0
          %v1190 = vadd.f32 %v1029, %v1189
          %v1191 = vpop.f32.mrb[0].mxu0
          %1192 = vmatprep.mubr.bf16.mxu0 %v702
          %1193 = vmatmul.mubr.bf16.gmra.mrb[0].mxu0 %v701
          %v1194 = vpop.f32.mrb[0].mxu0
          %v1195 = vadd.f32 %v1034, %v1194
          %v1196 = vpop.f32.mrb[0].mxu0
          %v1197 = vpop.f32.mrb[0].mxu0
          %v1198 = vadd.f32 %v1037, %v1197
          %v1199 = vpop.f32.mrb[0].mxu0
          %1200 = vmatprep.mubr.bf16.mxu0 %v706
          %1201 = vmatmul.mubr.bf16.gmra.mrb[0].mxu0 %v705
          %v1202 = vpop.f32.mrb[0].mxu0
          %v1203 = vadd.f32 %v1042, %v1202
          %v1204 = vpop.f32.mrb[0].mxu0
          %v1205 = vpop.f32.mrb[0].mxu0
          %v1206 = vadd.f32 %v1045, %v1205
          %v1207 = vpop.f32.mrb[0].mxu0
          %1208 = vmatprep.mubr.bf16.mxu0 %v710
          %1209 = vmatmul.mubr.bf16.gmra.mrb[0].mxu0 %v709
          %v1210 = vpop.f32.mrb[0].mxu0
          %v1211 = vadd.f32 %v1050, %v1210
          %v1212 = vpop.f32.mrb[0].mxu0
          %v1213 = vpop.f32.mrb[0].mxu0
          %v1214 = vadd.f32 %v1053, %v1213
          %v1215 = vpop.f32.mrb[0].mxu0
          %1216 = vmatprep.mubr.bf16.mxu0 %v714
          %1217 = vmatmul.mubr.bf16.gmra.mrb[0].mxu0 %v713
          %v1218 = vpop.f32.mrb[0].mxu0
          %v1219 = vadd.f32 %v1058, %v1218
          %v1220 = vpop.f32.mrb[0].mxu0
          %v1221 = vpop.f32.mrb[0].mxu0
          %v1222 = vadd.f32 %v1061, %v1221
          %v1223 = vpop.f32.mrb[0].mxu0
          %1224 = vmatprep.mubr.bf16.mxu0 %v718
          %1225 = vmatmul.mubr.bf16.gmra.mrb[0].mxu0 %v717
          %v1226 = vpop.f32.mrb[0].mxu0
          %v1227 = vadd.f32 %v1066, %v1226
          %v1228 = vpop.f32.mrb[0].mxu0
          %v1229 = vpop.f32.mrb[0].mxu0
          %v1230 = vadd.f32 %v1069, %v1229
          %v1231 = vpop.f32.mrb[0].mxu0
          %1232 = vdwg.mxu0
          %v1233 = vadd.f32 %v591, %v1107
          %v1234 = vadd.f32 %v592, %v1110
          %v1235 = vadd.f32 %v593, %v1115
          %v1236 = vadd.f32 %v594, %v1118
          %v1237 = vadd.f32 %v595, %v1123
          %v1238 = vadd.f32 %v596, %v1126
          %v1239 = vadd.f32 %v597, %v1131
          %v1240 = vadd.f32 %v598, %v1134
          %v1241 = vadd.f32 %v599, %v1139
          %v1242 = vadd.f32 %v600, %v1142
          %v1243 = vadd.f32 %v601, %v1147
          %v1244 = vadd.f32 %v602, %v1150
          %v1245 = vadd.f32 %v603, %v1155
          %v1246 = vadd.f32 %v604, %v1158
          %v1247 = vadd.f32 %v605, %v1163
          %v1248 = vadd.f32 %v606, %v1166
          %v1249 = vadd.f32 %v607, %v1171
          %v1250 = vadd.f32 %v608, %v1174
          %v1251 = vadd.f32 %v609, %v1179
          %v1252 = vadd.f32 %v610, %v1182
          %v1253 = vadd.f32 %v611, %v1187
          %v1254 = vadd.f32 %v612, %v1190
          %v1255 = vadd.f32 %v613, %v1195
          %v1256 = vadd.f32 %v614, %v1198
          %v1257 = vadd.f32 %v615, %v1203
          %v1258 = vadd.f32 %v616, %v1206
          %v1259 = vadd.f32 %v617, %v1211
          %v1260 = vadd.f32 %v618, %v1214
          %v1261 = vadd.f32 %v619, %v1219
          %v1262 = vadd.f32 %v620, %v1222
          %v1263 = vadd.f32 %v621, %v1227
          %v1264 = vadd.f32 %v622, %v1230
          %vm1265 = vcmask 64512
          %1266 = vst.msk [vmem:[#allocation2] sm:$0xff] %vm1265, %v1233
          %1267 = vst.msk [vmem:[#allocation2 + $0x8] sm:$0xff] %vm1265, %v1234
          %1268 = vst.msk [vmem:[#allocation2 + $0x10] sm:$0xff] %vm1265, %v1235
          %1269 = vst.msk [vmem:[#allocation2 + $0x18] sm:$0xff] %vm1265, %v1236
          %1270 = vst.msk [vmem:[#allocation2 + $0x20] sm:$0xff] %vm1265, %v1237
          %1271 = vst.msk [vmem:[#allocation2 + $0x28] sm:$0xff] %vm1265, %v1238
          %1272 = vst.msk [vmem:[#allocation2 + $0x30] sm:$0xff] %vm1265, %v1239
          %1273 = vst.msk [vmem:[#allocation2 + $0x38] sm:$0xff] %vm1265, %v1240
          %1274 = vst.msk [vmem:[#allocation2 + $0x40] sm:$0xff] %vm1265, %v1241
          %1275 = vst.msk [vmem:[#allocation2 + $0x48] sm:$0xff] %vm1265, %v1242
          %1276 = vst.msk [vmem:[#allocation2 + $0x50] sm:$0xff] %vm1265, %v1243
          %1277 = vst.msk [vmem:[#allocation2 + $0x58] sm:$0xff] %vm1265, %v1244
          %1278 = vst.msk [vmem:[#allocation2 + $0x60] sm:$0xff] %vm1265, %v1245
          %1279 = vst.msk [vmem:[#allocation2 + $0x68] sm:$0xff] %vm1265, %v1246
          %1280 = vst.msk [vmem:[#allocation2 + $0x70] sm:$0xff] %vm1265, %v1247
          %1281 = vst.msk [vmem:[#allocation2 + $0x78] sm:$0xff] %vm1265, %v1248
          %1282 = vst.msk [vmem:[#allocation2 + $0x80] sm:$0xff] %vm1265, %v1249
          %1283 = vst.msk [vmem:[#allocation2 + $0x88] sm:$0xff] %vm1265, %v1250
          %1284 = vst.msk [vmem:[#allocation2 + $0x90] sm:$0xff] %vm1265, %v1251
          %1285 = vst.msk [vmem:[#allocation2 + $0x98] sm:$0xff] %vm1265, %v1252
          %1286 = vst.msk [vmem:[#allocation2 + $0xa0] sm:$0xff] %vm1265, %v1253
          %1287 = vst.msk [vmem:[#allocation2 + $0xa8] sm:$0xff] %vm1265, %v1254
          %1288 = vst.msk [vmem:[#allocation2 + $0xb0] sm:$0xff] %vm1265, %v1255
          %1289 = vst.msk [vmem:[#allocation2 + $0xb8] sm:$0xff] %vm1265, %v1256
          %1290 = vst.msk [vmem:[#allocation2 + $0xc0] sm:$0xff] %vm1265, %v1257
          %1291 = vst.msk [vmem:[#allocation2 + $0xc8] sm:$0xff] %vm1265, %v1258
          %1292 = vst.msk [vmem:[#allocation2 + $0xd0] sm:$0xff] %vm1265, %v1259
          %1293 = vst.msk [vmem:[#allocation2 + $0xd8] sm:$0xff] %vm1265, %v1260
          %1294 = vst.msk [vmem:[#allocation2 + $0xe0] sm:$0xff] %vm1265, %v1261
          %1295 = vst.msk [vmem:[#allocation2 + $0xe8] sm:$0xff] %vm1265, %v1262
          %1296 = vst.msk [vmem:[#allocation2 + $0xf0] sm:$0xff] %vm1265, %v1263
          %1297 = vst.msk [vmem:[#allocation2 + $0xf8] sm:$0xff] %vm1265, %v1264
        $region83: #{tpu_custom_call.1} parent=70 // pred_fallthru
          _
        %p1298 = scmp.eq.s32.totalorder %s36, 1
        // Predicated region
        $region84: #{tpu_custom_call.1} parent=70 // pred_check
          %p1299 = pneg %p1298
        $region85: #{tpu_custom_call.1} parent=70 // pred_check_branch
          %1301 = sbr.rel (%p1299) target = $region87
        $region86: #{tpu_custom_call.1} parent=70 // pred_region
          %v1302 = vld [vmem:[#allocation2] sm:$0xff]
          %v1303 = vld [vmem:[#allocation2 + $0x8] sm:$0xff]
          %v1304 = vld [vmem:[#allocation2 + $0x10] sm:$0xff]
          %v1305 = vld [vmem:[#allocation2 + $0x18] sm:$0xff]
          %v1306 = vld [vmem:[#allocation2 + $0x20] sm:$0xff]
          %v1307 = vld [vmem:[#allocation2 + $0x28] sm:$0xff]
          %v1308 = vld [vmem:[#allocation2 + $0x30] sm:$0xff]
          %v1309 = vld [vmem:[#allocation2 + $0x38] sm:$0xff]
          %v1310 = vld [vmem:[#allocation2 + $0x40] sm:$0xff]
          %v1311 = vld [vmem:[#allocation2 + $0x48] sm:$0xff]
          %v1312 = vld [vmem:[#allocation2 + $0x50] sm:$0xff]
          %v1313 = vld [vmem:[#allocation2 + $0x58] sm:$0xff]
          %v1314 = vld [vmem:[#allocation2 + $0x60] sm:$0xff]
          %v1315 = vld [vmem:[#allocation2 + $0x68] sm:$0xff]
          %v1316 = vld [vmem:[#allocation2 + $0x70] sm:$0xff]
          %v1317 = vld [vmem:[#allocation2 + $0x78] sm:$0xff]
          %v1318 = vld [vmem:[#allocation2 + $0x80] sm:$0xff]
          %v1319 = vld [vmem:[#allocation2 + $0x88] sm:$0xff]
          %v1320 = vld [vmem:[#allocation2 + $0x90] sm:$0xff]
          %v1321 = vld [vmem:[#allocation2 + $0x98] sm:$0xff]
          %v1322 = vld [vmem:[#allocation2 + $0xa0] sm:$0xff]
          %v1323 = vld [vmem:[#allocation2 + $0xa8] sm:$0xff]
          %v1324 = vld [vmem:[#allocation2 + $0xb0] sm:$0xff]
          %v1325 = vld [vmem:[#allocation2 + $0xb8] sm:$0xff]
          %v1326 = vld [vmem:[#allocation2 + $0xc0] sm:$0xff]
          %v1327 = vld [vmem:[#allocation2 + $0xc8] sm:$0xff]
          %v1328 = vld [vmem:[#allocation2 + $0xd0] sm:$0xff]
          %v1329 = vld [vmem:[#allocation2 + $0xd8] sm:$0xff]
          %v1330 = vld [vmem:[#allocation2 + $0xe0] sm:$0xff]
          %v1331 = vld [vmem:[#allocation2 + $0xe8] sm:$0xff]
          %v1332 = vld [vmem:[#allocation2 + $0xf0] sm:$0xff]
          %v1333 = vld [vmem:[#allocation2 + $0xf8] sm:$0xff]
          %v1334 = vld [vmem:[%s468] sm:$0xff]
          %v1335 = vld [vmem:[%s468 + $0x8] sm:$0xff]
          %v1336 = vld [vmem:[%s468 + $0x10] sm:$0xff]
          %v1337 = vld [vmem:[%s468 + $0x18] sm:$0xff]
          %v1338 = vld [vmem:[%s468 + $0x20] sm:$0xff]
          %v1339 = vld [vmem:[%s468 + $0x28] sm:$0xff]
          %v1340 = vld [vmem:[%s468 + $0x30] sm:$0xff]
          %v1341 = vld [vmem:[%s468 + $0x38] sm:$0xff]
          %v1342 = vld [vmem:[%s468 + $0x40] sm:$0xff]
          %v1343 = vld [vmem:[%s468 + $0x48] sm:$0xff]
          %v1344 = vld [vmem:[%s468 + $0x50] sm:$0xff]
          %v1345 = vld [vmem:[%s468 + $0x58] sm:$0xff]
          %v1346 = vld [vmem:[%s468 + $0x60] sm:$0xff]
          %v1347 = vld [vmem:[%s468 + $0x68] sm:$0xff]
          %v1348 = vld [vmem:[%s468 + $0x70] sm:$0xff]
          %v1349 = vld [vmem:[%s468 + $0x78] sm:$0xff]
          %v1350 = vld [vmem:[%s468 + $0x80] sm:$0xff]
          %v1351 = vld [vmem:[%s468 + $0x88] sm:$0xff]
          %v1352 = vld [vmem:[%s468 + $0x90] sm:$0xff]
          %v1353 = vld [vmem:[%s468 + $0x98] sm:$0xff]
          %v1354 = vld [vmem:[%s468 + $0xa0] sm:$0xff]
          %v1355 = vld [vmem:[%s468 + $0xa8] sm:$0xff]
          %v1356 = vld [vmem:[%s468 + $0xb0] sm:$0xff]
          %v1357 = vld [vmem:[%s468 + $0xb8] sm:$0xff]
          %v1358 = vld [vmem:[%s468 + $0xc0] sm:$0xff]
          %v1359 = vld [vmem:[%s468 + $0xc8] sm:$0xff]
          %v1360 = vld [vmem:[%s468 + $0xd0] sm:$0xff]
          %v1361 = vld [vmem:[%s468 + $0xd8] sm:$0xff]
          %v1362 = vld [vmem:[%s468 + $0xe0] sm:$0xff]
          %v1363 = vld [vmem:[%s468 + $0xe8] sm:$0xff]
          %v1364 = vld [vmem:[%s468 + $0xf0] sm:$0xff]
          %v1365 = vld [vmem:[%s468 + $0xf8] sm:$0xff]
          %1367 = vset.pattern.permute.xlu0 0
          %1368 = vperm.xlu0 %1367, %v1334
          %v1369 = vpop.permute.xlu0 %1368
          %1372 = vset.pattern.permute.xlu0 0
          %1373 = vperm.xlu0 %1372, %v1335
          %v1374 = vpop.permute.xlu0 %1373
          %1377 = vset.pattern.permute.xlu0 0
          %1378 = vperm.xlu0 %1377, %v1336
          %v1379 = vpop.permute.xlu0 %1378
          %1382 = vset.pattern.permute.xlu0 0
          %1383 = vperm.xlu0 %1382, %v1337
          %v1384 = vpop.permute.xlu0 %1383
          %1387 = vset.pattern.permute.xlu0 0
          %1388 = vperm.xlu0 %1387, %v1338
          %v1389 = vpop.permute.xlu0 %1388
          %1392 = vset.pattern.permute.xlu0 0
          %1393 = vperm.xlu0 %1392, %v1339
          %v1394 = vpop.permute.xlu0 %1393
          %1397 = vset.pattern.permute.xlu0 0
          %1398 = vperm.xlu0 %1397, %v1340
          %v1399 = vpop.permute.xlu0 %1398
          %1402 = vset.pattern.permute.xlu0 0
          %1403 = vperm.xlu0 %1402, %v1341
          %v1404 = vpop.permute.xlu0 %1403
          %1407 = vset.pattern.permute.xlu0 0
          %1408 = vperm.xlu0 %1407, %v1342
          %v1409 = vpop.permute.xlu0 %1408
          %1412 = vset.pattern.permute.xlu0 0
          %1413 = vperm.xlu0 %1412, %v1343
          %v1414 = vpop.permute.xlu0 %1413
          %1417 = vset.pattern.permute.xlu0 0
          %1418 = vperm.xlu0 %1417, %v1344
          %v1419 = vpop.permute.xlu0 %1418
          %1422 = vset.pattern.permute.xlu0 0
          %1423 = vperm.xlu0 %1422, %v1345
          %v1424 = vpop.permute.xlu0 %1423
          %1427 = vset.pattern.permute.xlu0 0
          %1428 = vperm.xlu0 %1427, %v1346
          %v1429 = vpop.permute.xlu0 %1428
          %1432 = vset.pattern.permute.xlu0 0
          %1433 = vperm.xlu0 %1432, %v1347
          %v1434 = vpop.permute.xlu0 %1433
          %1437 = vset.pattern.permute.xlu0 0
          %1438 = vperm.xlu0 %1437, %v1348
          %v1439 = vpop.permute.xlu0 %1438
          %1442 = vset.pattern.permute.xlu0 0
          %1443 = vperm.xlu0 %1442, %v1349
          %v1444 = vpop.permute.xlu0 %1443
          %1447 = vset.pattern.permute.xlu0 0
          %1448 = vperm.xlu0 %1447, %v1350
          %v1449 = vpop.permute.xlu0 %1448
          %1452 = vset.pattern.permute.xlu0 0
          %1453 = vperm.xlu0 %1452, %v1351
          %v1454 = vpop.permute.xlu0 %1453
          %1457 = vset.pattern.permute.xlu0 0
          %1458 = vperm.xlu0 %1457, %v1352
          %v1459 = vpop.permute.xlu0 %1458
          %1462 = vset.pattern.permute.xlu0 0
          %1463 = vperm.xlu0 %1462, %v1353
          %v1464 = vpop.permute.xlu0 %1463
          %1467 = vset.pattern.permute.xlu0 0
          %1468 = vperm.xlu0 %1467, %v1354
          %v1469 = vpop.permute.xlu0 %1468
          %1472 = vset.pattern.permute.xlu0 0
          %1473 = vperm.xlu0 %1472, %v1355
          %v1474 = vpop.permute.xlu0 %1473
          %1477 = vset.pattern.permute.xlu0 0
          %1478 = vperm.xlu0 %1477, %v1356
          %v1479 = vpop.permute.xlu0 %1478
          %1482 = vset.pattern.permute.xlu0 0
          %1483 = vperm.xlu0 %1482, %v1357
          %v1484 = vpop.permute.xlu0 %1483
          %1487 = vset.pattern.permute.xlu0 0
          %1488 = vperm.xlu0 %1487, %v1358
          %v1489 = vpop.permute.xlu0 %1488
          %1492 = vset.pattern.permute.xlu0 0
          %1493 = vperm.xlu0 %1492, %v1359
          %v1494 = vpop.permute.xlu0 %1493
          %1497 = vset.pattern.permute.xlu0 0
          %1498 = vperm.xlu0 %1497, %v1360
          %v1499 = vpop.permute.xlu0 %1498
          %1502 = vset.pattern.permute.xlu0 0
          %1503 = vperm.xlu0 %1502, %v1361
          %v1504 = vpop.permute.xlu0 %1503
          %1507 = vset.pattern.permute.xlu0 0
          %1508 = vperm.xlu0 %1507, %v1362
          %v1509 = vpop.permute.xlu0 %1508
          %1512 = vset.pattern.permute.xlu0 0
          %1513 = vperm.xlu0 %1512, %v1363
          %v1514 = vpop.permute.xlu0 %1513
          %1517 = vset.pattern.permute.xlu0 0
          %1518 = vperm.xlu0 %1517, %v1364
          %v1519 = vpop.permute.xlu0 %1518
          %1522 = vset.pattern.permute.xlu0 0
          %1523 = vperm.xlu0 %1522, %v1365
          %v1524 = vpop.permute.xlu0 %1523
          %v1526 = vmul.f32 %v1302, %v1369
          %v1527 = vmul.f32 %v1303, %v1374
          %v1528 = vmul.f32 %v1304, %v1379
          %v1529 = vmul.f32 %v1305, %v1384
          %v1530 = vmul.f32 %v1306, %v1389
          %v1531 = vmul.f32 %v1307, %v1394
          %v1532 = vmul.f32 %v1308, %v1399
          %v1533 = vmul.f32 %v1309, %v1404
          %v1534 = vmul.f32 %v1310, %v1409
          %v1535 = vmul.f32 %v1311, %v1414
          %v1536 = vmul.f32 %v1312, %v1419
          %v1537 = vmul.f32 %v1313, %v1424
          %v1538 = vmul.f32 %v1314, %v1429
          %v1539 = vmul.f32 %v1315, %v1434
          %v1540 = vmul.f32 %v1316, %v1439
          %v1541 = vmul.f32 %v1317, %v1444
          %v1542 = vmul.f32 %v1318, %v1449
          %v1543 = vmul.f32 %v1319, %v1454
          %v1544 = vmul.f32 %v1320, %v1459
          %v1545 = vmul.f32 %v1321, %v1464
          %v1546 = vmul.f32 %v1322, %v1469
          %v1547 = vmul.f32 %v1323, %v1474
          %v1548 = vmul.f32 %v1324, %v1479
          %v1549 = vmul.f32 %v1325, %v1484
          %v1550 = vmul.f32 %v1326, %v1489
          %v1551 = vmul.f32 %v1327, %v1494
          %v1552 = vmul.f32 %v1328, %v1499
          %v1553 = vmul.f32 %v1329, %v1504
          %v1554 = vmul.f32 %v1330, %v1509
          %v1555 = vmul.f32 %v1331, %v1514
          %v1556 = vmul.f32 %v1332, %v1519
          %v1557 = vmul.f32 %v1333, %v1524
          %v1558 = vld [vmem:[%s6] sm:$0xff]
          %v1559 = vld [vmem:[%s462] sm:$0xff]
          %v1560 = vld [vmem:[%s462 + $0x8] sm:$0xff]
          %v1561 = vld [vmem:[%s462 + $0x10] sm:$0xff]
          %v1562 = vld [vmem:[%s462 + $0x18] sm:$0xff]
          %v1563 = vld [vmem:[%s462 + $0x20] sm:$0xff]
          %v1564 = vld [vmem:[%s462 + $0x28] sm:$0xff]
          %v1565 = vld [vmem:[%s462 + $0x30] sm:$0xff]
          %v1566 = vld [vmem:[%s462 + $0x38] sm:$0xff]
          %v1567 = vld [vmem:[%s462 + $0x40] sm:$0xff]
          %v1568 = vld [vmem:[%s462 + $0x48] sm:$0xff]
          %v1569 = vld [vmem:[%s462 + $0x50] sm:$0xff]
          %v1570 = vld [vmem:[%s462 + $0x58] sm:$0xff]
          %v1571 = vld [vmem:[%s462 + $0x60] sm:$0xff]
          %v1572 = vld [vmem:[%s462 + $0x68] sm:$0xff]
          %v1573 = vld [vmem:[%s462 + $0x70] sm:$0xff]
          %v1574 = vld [vmem:[%s462 + $0x78] sm:$0xff]
          %v1575 = vld [vmem:[%s462 + $0x80] sm:$0xff]
          %v1576 = vld [vmem:[%s462 + $0x88] sm:$0xff]
          %v1577 = vld [vmem:[%s462 + $0x90] sm:$0xff]
          %v1578 = vld [vmem:[%s462 + $0x98] sm:$0xff]
          %v1579 = vld [vmem:[%s462 + $0xa0] sm:$0xff]
          %v1580 = vld [vmem:[%s462 + $0xa8] sm:$0xff]
          %v1581 = vld [vmem:[%s462 + $0xb0] sm:$0xff]
          %v1582 = vld [vmem:[%s462 + $0xb8] sm:$0xff]
          %v1583 = vld [vmem:[%s462 + $0xc0] sm:$0xff]
          %v1584 = vld [vmem:[%s462 + $0xc8] sm:$0xff]
          %v1585 = vld [vmem:[%s462 + $0xd0] sm:$0xff]
          %v1586 = vld [vmem:[%s462 + $0xd8] sm:$0xff]
          %v1587 = vld [vmem:[%s462 + $0xe0] sm:$0xff]
          %v1588 = vld [vmem:[%s462 + $0xe8] sm:$0xff]
          %v1589 = vld [vmem:[%s462 + $0xf0] sm:$0xff]
          %v1590 = vld [vmem:[%s462 + $0xf8] sm:$0xff]
          %v1591 = vld [vmem:[%s7] sm:$0xff]
          %vm1592 = vcmask 64512
          %v1594 = vsel %vm1592, %v1559, 0
          %v1597 = vsel %vm1592, %v1560, 0
          %v1600 = vsel %vm1592, %v1561, 0
          %v1603 = vsel %vm1592, %v1562, 0
          %v1606 = vsel %vm1592, %v1563, 0
          %v1609 = vsel %vm1592, %v1564, 0
          %v1612 = vsel %vm1592, %v1565, 0
          %v1615 = vsel %vm1592, %v1566, 0
          %v1618 = vsel %vm1592, %v1567, 0
          %v1621 = vsel %vm1592, %v1568, 0
          %v1624 = vsel %vm1592, %v1569, 0
          %v1627 = vsel %vm1592, %v1570, 0
          %v1630 = vsel %vm1592, %v1571, 0
          %v1633 = vsel %vm1592, %v1572, 0
          %v1636 = vsel %vm1592, %v1573, 0
          %v1639 = vsel %vm1592, %v1574, 0
          %v1642 = vsel %vm1592, %v1575, 0
          %v1645 = vsel %vm1592, %v1576, 0
          %v1648 = vsel %vm1592, %v1577, 0
          %v1651 = vsel %vm1592, %v1578, 0
          %v1654 = vsel %vm1592, %v1579, 0
          %v1657 = vsel %vm1592, %v1580, 0
          %v1660 = vsel %vm1592, %v1581, 0
          %v1663 = vsel %vm1592, %v1582, 0
          %v1666 = vsel %vm1592, %v1583, 0
          %v1669 = vsel %vm1592, %v1584, 0
          %v1672 = vsel %vm1592, %v1585, 0
          %v1675 = vsel %vm1592, %v1586, 0
          %v1678 = vsel %vm1592, %v1587, 0
          %v1681 = vsel %vm1592, %v1588, 0
          %v1684 = vsel %vm1592, %v1589, 0
          %v1687 = vsel %vm1592, %v1590, 0
          %1689 = vmatprep.subr.mxu0 0.0
          %1690 = vmatpush1.msra.mxu0 %v1591
          %1691 = vmatprep.subr.mxu0 0.0
          %1692 = vmatpush1.msra.mxu0 0.0
          %1693 = vmatprep.subr.mxu0 0.0
          %1694 = vmatpush1.msra.mxu0 0.0
          %1695 = vmatprep.subr.mxu0 0.0
          %1696 = vmatpush1.msra.mxu0 0.0
          %1697 = vmatprep.subr.mxu0 0.0
          %1698 = vmatpush1.msra.mxu0 0.0
          %1699 = vmatprep.subr.mxu0 0.0
          %1700 = vmatpush1.msra.mxu0 0.0
          %1701 = vmatprep.subr.mxu0 0.0
          %1702 = vmatpush1.msra.mxu0 0.0
          %1703 = vmatprep.subr.mxu0 0.0
          %1704 = vmatpush1.msra.mxu0 0.0
          %1705 = vmatprep.subr.mxu0 0.0
          %1706 = vmatpush1.msra.mxu0 0.0
          %1707 = vmatprep.subr.mxu0 0.0
          %1708 = vmatpush1.msra.mxu0 0.0
          %1709 = vmatprep.subr.mxu0 0.0
          %1710 = vmatpush1.msra.mxu0 0.0
          %1711 = vmatprep.subr.mxu0 0.0
          %1712 = vmatpush1.msra.mxu0 0.0
          %1713 = vmatprep.subr.mxu0 0.0
          %1714 = vmatpush1.msra.mxu0 0.0
          %1715 = vmatprep.subr.mxu0 0.0
          %1716 = vmatpush1.msra.mxu0 0.0
          %1717 = vmatprep.subr.mxu0 0.0
          %1718 = vmatpush1.msra.mxu0 0.0
          %1719 = vmatprep.subr.mxu0 0.0
          %1720 = vmatpush1.msra.mxu0 0.0
          %1721 = vmatprep.subr.mxu0 0.0
          %1722 = vmatpush1.msra.mxu0 0.0
          %1723 = vmatprep.subr.mxu0 0.0
          %1724 = vmatpush1.msra.mxu0 0.0
          %1725 = vmatprep.subr.mxu0 0.0
          %1726 = vmatpush1.msra.mxu0 0.0
          %1727 = vmatprep.subr.mxu0 0.0
          %1728 = vmatpush1.msra.mxu0 0.0
          %1729 = vmatprep.subr.mxu0 0.0
          %1730 = vmatpush1.msra.mxu0 0.0
          %1731 = vmatprep.subr.mxu0 0.0
          %1732 = vmatpush1.msra.mxu0 0.0
          %1733 = vmatprep.subr.mxu0 0.0
          %1734 = vmatpush1.msra.mxu0 0.0
          %1735 = vmatprep.subr.mxu0 0.0
          %1736 = vmatpush1.msra.mxu0 0.0
          %1737 = vmatprep.subr.mxu0 0.0
          %1738 = vmatpush1.msra.mxu0 0.0
          %1739 = vmatprep.subr.mxu0 0.0
          %1740 = vmatpush1.msra.mxu0 0.0
          %1741 = vmatprep.subr.mxu0 0.0
          %1742 = vmatpush1.msra.mxu0 0.0
          %1743 = vmatprep.subr.mxu0 0.0
          %1744 = vmatpush1.msra.mxu0 0.0
          %1745 = vmatprep.subr.mxu0 0.0
          %1746 = vmatpush1.msra.mxu0 0.0
          %1747 = vmatprep.subr.mxu0 0.0
          %1748 = vmatpush1.msra.mxu0 0.0
          %1749 = vmatprep.subr.mxu0 0.0
          %1750 = vmatpush1.msra.mxu0 0.0
          %1751 = vmatprep.subr.mxu0 0.0
          %1752 = vmatpush1.msra.mxu0 0.0
          %1753 = vmatprep.mubr.f32.mxu0 0.0
          %1754 = vmatmul.mubr.f32.gmra.mrb[0].mxu0 %v1594
          %v1755 = vpop.f32.mrb[0].mxu0
          %v1756 = vadd.f32 0.0, %v1755
          %v1757 = vpop.f32.mrb[0].mxu0
          %1758 = vmatprep.mubr.f32.mxu0 0.0
          %1759 = vmatmul.mubr.f32.gmra.mrb[0].mxu0 %v1597
          %v1760 = vpop.f32.mrb[0].mxu0
          %v1761 = vadd.f32 0.0, %v1760
          %v1762 = vpop.f32.mrb[0].mxu0
          %1763 = vmatprep.mubr.f32.mxu0 0.0
          %1764 = vmatmul.mubr.f32.gmra.mrb[0].mxu0 %v1600
          %v1765 = vpop.f32.mrb[0].mxu0
          %v1766 = vadd.f32 0.0, %v1765
          %v1767 = vpop.f32.mrb[0].mxu0
          %1768 = vmatprep.mubr.f32.mxu0 0.0
          %1769 = vmatmul.mubr.f32.gmra.mrb[0].mxu0 %v1603
          %v1770 = vpop.f32.mrb[0].mxu0
          %v1771 = vadd.f32 0.0, %v1770
          %v1772 = vpop.f32.mrb[0].mxu0
          %1773 = vmatprep.mubr.f32.mxu0 0.0
          %1774 = vmatmul.mubr.f32.gmra.mrb[0].mxu0 %v1606
          %v1775 = vpop.f32.mrb[0].mxu0
          %v1776 = vadd.f32 0.0, %v1775
          %v1777 = vpop.f32.mrb[0].mxu0
          %1778 = vmatprep.mubr.f32.mxu0 0.0
          %1779 = vmatmul.mubr.f32.gmra.mrb[0].mxu0 %v1609
          %v1780 = vpop.f32.mrb[0].mxu0
          %v1781 = vadd.f32 0.0, %v1780
          %v1782 = vpop.f32.mrb[0].mxu0
          %1783 = vmatprep.mubr.f32.mxu0 0.0
          %1784 = vmatmul.mubr.f32.gmra.mrb[0].mxu0 %v1612
          %v1785 = vpop.f32.mrb[0].mxu0
          %v1786 = vadd.f32 0.0, %v1785
          %v1787 = vpop.f32.mrb[0].mxu0
          %1788 = vmatprep.mubr.f32.mxu0 0.0
          %1789 = vmatmul.mubr.f32.gmra.mrb[0].mxu0 %v1615
          %v1790 = vpop.f32.mrb[0].mxu0
          %v1791 = vadd.f32 0.0, %v1790
          %v1792 = vpop.f32.mrb[0].mxu0
          %1793 = vmatprep.mubr.f32.mxu0 0.0
          %1794 = vmatmul.mubr.f32.gmra.mrb[0].mxu0 %v1618
          %v1795 = vpop.f32.mrb[0].mxu0
          %v1796 = vadd.f32 0.0, %v1795
          %v1797 = vpop.f32.mrb[0].mxu0
          %1798 = vmatprep.mubr.f32.mxu0 0.0
          %1799 = vmatmul.mubr.f32.gmra.mrb[0].mxu0 %v1621
          %v1800 = vpop.f32.mrb[0].mxu0
          %v1801 = vadd.f32 0.0, %v1800
          %v1802 = vpop.f32.mrb[0].mxu0
          %1803 = vmatprep.mubr.f32.mxu0 0.0
          %1804 = vmatmul.mubr.f32.gmra.mrb[0].mxu0 %v1624
          %v1805 = vpop.f32.mrb[0].mxu0
          %v1806 = vadd.f32 0.0, %v1805
          %v1807 = vpop.f32.mrb[0].mxu0
          %1808 = vmatprep.mubr.f32.mxu0 0.0
          %1809 = vmatmul.mubr.f32.gmra.mrb[0].mxu0 %v1627
          %v1810 = vpop.f32.mrb[0].mxu0
          %v1811 = vadd.f32 0.0, %v1810
          %v1812 = vpop.f32.mrb[0].mxu0
          %1813 = vmatprep.mubr.f32.mxu0 0.0
          %1814 = vmatmul.mubr.f32.gmra.mrb[0].mxu0 %v1630
          %v1815 = vpop.f32.mrb[0].mxu0
          %v1816 = vadd.f32 0.0, %v1815
          %v1817 = vpop.f32.mrb[0].mxu0
          %1818 = vmatprep.mubr.f32.mxu0 0.0
          %1819 = vmatmul.mubr.f32.gmra.mrb[0].mxu0 %v1633
          %v1820 = vpop.f32.mrb[0].mxu0
          %v1821 = vadd.f32 0.0, %v1820
          %v1822 = vpop.f32.mrb[0].mxu0
          %1823 = vmatprep.mubr.f32.mxu0 0.0
          %1824 = vmatmul.mubr.f32.gmra.mrb[0].mxu0 %v1636
          %v1825 = vpop.f32.mrb[0].mxu0
          %v1826 = vadd.f32 0.0, %v1825
          %v1827 = vpop.f32.mrb[0].mxu0
          %1828 = vmatprep.mubr.f32.mxu0 0.0
          %1829 = vmatmul.mubr.f32.gmra.mrb[0].mxu0 %v1639
          %v1830 = vpop.f32.mrb[0].mxu0
          %v1831 = vadd.f32 0.0, %v1830
          %v1832 = vpop.f32.mrb[0].mxu0
          %1833 = vmatprep.mubr.f32.mxu0 0.0
          %1834 = vmatmul.mubr.f32.gmra.mrb[0].mxu0 %v1642
          %v1835 = vpop.f32.mrb[0].mxu0
          %v1836 = vadd.f32 0.0, %v1835
          %v1837 = vpop.f32.mrb[0].mxu0
          %1838 = vmatprep.mubr.f32.mxu0 0.0
          %1839 = vmatmul.mubr.f32.gmra.mrb[0].mxu0 %v1645
          %v1840 = vpop.f32.mrb[0].mxu0
          %v1841 = vadd.f32 0.0, %v1840
          %v1842 = vpop.f32.mrb[0].mxu0
          %1843 = vmatprep.mubr.f32.mxu0 0.0
          %1844 = vmatmul.mubr.f32.gmra.mrb[0].mxu0 %v1648
          %v1845 = vpop.f32.mrb[0].mxu0
          %v1846 = vadd.f32 0.0, %v1845
          %v1847 = vpop.f32.mrb[0].mxu0
          %1848 = vmatprep.mubr.f32.mxu0 0.0
          %1849 = vmatmul.mubr.f32.gmra.mrb[0].mxu0 %v1651
          %v1850 = vpop.f32.mrb[0].mxu0
          %v1851 = vadd.f32 0.0, %v1850
          %v1852 = vpop.f32.mrb[0].mxu0
          %1853 = vmatprep.mubr.f32.mxu0 0.0
          %1854 = vmatmul.mubr.f32.gmra.mrb[0].mxu0 %v1654
          %v1855 = vpop.f32.mrb[0].mxu0
          %v1856 = vadd.f32 0.0, %v1855
          %v1857 = vpop.f32.mrb[0].mxu0
          %1858 = vmatprep.mubr.f32.mxu0 0.0
          %1859 = vmatmul.mubr.f32.gmra.mrb[0].mxu0 %v1657
          %v1860 = vpop.f32.mrb[0].mxu0
          %v1861 = vadd.f32 0.0, %v1860
          %v1862 = vpop.f32.mrb[0].mxu0
          %1863 = vmatprep.mubr.f32.mxu0 0.0
          %1864 = vmatmul.mubr.f32.gmra.mrb[0].mxu0 %v1660
          %v1865 = vpop.f32.mrb[0].mxu0
          %v1866 = vadd.f32 0.0, %v1865
          %v1867 = vpop.f32.mrb[0].mxu0
          %1868 = vmatprep.mubr.f32.mxu0 0.0
          %1869 = vmatmul.mubr.f32.gmra.mrb[0].mxu0 %v1663
          %v1870 = vpop.f32.mrb[0].mxu0
          %v1871 = vadd.f32 0.0, %v1870
          %v1872 = vpop.f32.mrb[0].mxu0
          %1873 = vmatprep.mubr.f32.mxu0 0.0
          %1874 = vmatmul.mubr.f32.gmra.mrb[0].mxu0 %v1666
          %v1875 = vpop.f32.mrb[0].mxu0
          %v1876 = vadd.f32 0.0, %v1875
          %v1877 = vpop.f32.mrb[0].mxu0
          %1878 = vmatprep.mubr.f32.mxu0 0.0
          %1879 = vmatmul.mubr.f32.gmra.mrb[0].mxu0 %v1669
          %v1880 = vpop.f32.mrb[0].mxu0
          %v1881 = vadd.f32 0.0, %v1880
          %v1882 = vpop.f32.mrb[0].mxu0
          %1883 = vmatprep.mubr.f32.mxu0 0.0
          %1884 = vmatmul.mubr.f32.gmra.mrb[0].mxu0 %v1672
          %v1885 = vpop.f32.mrb[0].mxu0
          %v1886 = vadd.f32 0.0, %v1885
          %v1887 = vpop.f32.mrb[0].mxu0
          %1888 = vmatprep.mubr.f32.mxu0 0.0
          %1889 = vmatmul.mubr.f32.gmra.mrb[0].mxu0 %v1675
          %v1890 = vpop.f32.mrb[0].mxu0
          %v1891 = vadd.f32 0.0, %v1890
          %v1892 = vpop.f32.mrb[0].mxu0
          %1893 = vmatprep.mubr.f32.mxu0 0.0
          %1894 = vmatmul.mubr.f32.gmra.mrb[0].mxu0 %v1678
          %v1895 = vpop.f32.mrb[0].mxu0
          %v1896 = vadd.f32 0.0, %v1895
          %v1897 = vpop.f32.mrb[0].mxu0
          %1898 = vmatprep.mubr.f32.mxu0 0.0
          %1899 = vmatmul.mubr.f32.gmra.mrb[0].mxu0 %v1681
          %v1900 = vpop.f32.mrb[0].mxu0
          %v1901 = vadd.f32 0.0, %v1900
          %v1902 = vpop.f32.mrb[0].mxu0
          %1903 = vmatprep.mubr.f32.mxu0 0.0
          %1904 = vmatmul.mubr.f32.gmra.mrb[0].mxu0 %v1684
          %v1905 = vpop.f32.mrb[0].mxu0
          %v1906 = vadd.f32 0.0, %v1905
          %v1907 = vpop.f32.mrb[0].mxu0
          %1908 = vmatprep.mubr.f32.mxu0 0.0
          %1909 = vmatmul.mubr.f32.gmra.mrb[0].mxu0 %v1687
          %v1910 = vpop.f32.mrb[0].mxu0
          %v1911 = vadd.f32 0.0, %v1910
          %v1912 = vpop.f32.mrb[0].mxu0
          %1913 = vdwg.mxu0
          %v1915 = vsel %vm1592, %v1526, 0
          %v1918 = vsel %vm1592, %v1527, 0
          %v1921 = vsel %vm1592, %v1528, 0
          %v1924 = vsel %vm1592, %v1529, 0
          %v1927 = vsel %vm1592, %v1530, 0
          %v1930 = vsel %vm1592, %v1531, 0
          %v1933 = vsel %vm1592, %v1532, 0
          %v1936 = vsel %vm1592, %v1533, 0
          %v1939 = vsel %vm1592, %v1534, 0
          %v1942 = vsel %vm1592, %v1535, 0
          %v1945 = vsel %vm1592, %v1536, 0
          %v1948 = vsel %vm1592, %v1537, 0
          %v1951 = vsel %vm1592, %v1538, 0
          %v1954 = vsel %vm1592, %v1539, 0
          %v1957 = vsel %vm1592, %v1540, 0
          %v1960 = vsel %vm1592, %v1541, 0
          %v1963 = vsel %vm1592, %v1542, 0
          %v1966 = vsel %vm1592, %v1543, 0
          %v1969 = vsel %vm1592, %v1544, 0
          %v1972 = vsel %vm1592, %v1545, 0
          %v1975 = vsel %vm1592, %v1546, 0
          %v1978 = vsel %vm1592, %v1547, 0
          %v1981 = vsel %vm1592, %v1548, 0
          %v1984 = vsel %vm1592, %v1549, 0
          %v1987 = vsel %vm1592, %v1550, 0
          %v1990 = vsel %vm1592, %v1551, 0
          %v1993 = vsel %vm1592, %v1552, 0
          %v1996 = vsel %vm1592, %v1553, 0
          %v1999 = vsel %vm1592, %v1554, 0
          %v2002 = vsel %vm1592, %v1555, 0
          %v2005 = vsel %vm1592, %v1556, 0
          %v2008 = vsel %vm1592, %v1557, 0
          %2010 = vmatprep.subr.mxu0 0.0
          %2011 = vmatpush1.msra.mxu0 %v1558
          %2012 = vmatprep.subr.mxu0 0.0
          %2013 = vmatpush1.msra.mxu0 0.0
          %2014 = vmatprep.subr.mxu0 0.0
          %2015 = vmatpush1.msra.mxu0 0.0
          %2016 = vmatprep.subr.mxu0 0.0
          %2017 = vmatpush1.msra.mxu0 0.0
          %2018 = vmatprep.subr.mxu0 0.0
          %2019 = vmatpush1.msra.mxu0 0.0
          %2020 = vmatprep.subr.mxu0 0.0
          %2021 = vmatpush1.msra.mxu0 0.0
          %2022 = vmatprep.subr.mxu0 0.0
          %2023 = vmatpush1.msra.mxu0 0.0
          %2024 = vmatprep.subr.mxu0 0.0
          %2025 = vmatpush1.msra.mxu0 0.0
          %2026 = vmatprep.subr.mxu0 0.0
          %2027 = vmatpush1.msra.mxu0 0.0
          %2028 = vmatprep.subr.mxu0 0.0
          %2029 = vmatpush1.msra.mxu0 0.0
          %2030 = vmatprep.subr.mxu0 0.0
          %2031 = vmatpush1.msra.mxu0 0.0
          %2032 = vmatprep.subr.mxu0 0.0
          %2033 = vmatpush1.msra.mxu0 0.0
          %2034 = vmatprep.subr.mxu0 0.0
          %2035 = vmatpush1.msra.mxu0 0.0
          %2036 = vmatprep.subr.mxu0 0.0
          %2037 = vmatpush1.msra.mxu0 0.0
          %2038 = vmatprep.subr.mxu0 0.0
          %2039 = vmatpush1.msra.mxu0 0.0
          %2040 = vmatprep.subr.mxu0 0.0
          %2041 = vmatpush1.msra.mxu0 0.0
          %2042 = vmatprep.subr.mxu0 0.0
          %2043 = vmatpush1.msra.mxu0 0.0
          %2044 = vmatprep.subr.mxu0 0.0
          %2045 = vmatpush1.msra.mxu0 0.0
          %2046 = vmatprep.subr.mxu0 0.0
          %2047 = vmatpush1.msra.mxu0 0.0
          %2048 = vmatprep.subr.mxu0 0.0
          %2049 = vmatpush1.msra.mxu0 0.0
          %2050 = vmatprep.subr.mxu0 0.0
          %2051 = vmatpush1.msra.mxu0 0.0
          %2052 = vmatprep.subr.mxu0 0.0
          %2053 = vmatpush1.msra.mxu0 0.0
          %2054 = vmatprep.subr.mxu0 0.0
          %2055 = vmatpush1.msra.mxu0 0.0
          %2056 = vmatprep.subr.mxu0 0.0
          %2057 = vmatpush1.msra.mxu0 0.0
          %2058 = vmatprep.subr.mxu0 0.0
          %2059 = vmatpush1.msra.mxu0 0.0
          %2060 = vmatprep.subr.mxu0 0.0
          %2061 = vmatpush1.msra.mxu0 0.0
          %2062 = vmatprep.subr.mxu0 0.0
          %2063 = vmatpush1.msra.mxu0 0.0
          %2064 = vmatprep.subr.mxu0 0.0
          %2065 = vmatpush1.msra.mxu0 0.0
          %2066 = vmatprep.subr.mxu0 0.0
          %2067 = vmatpush1.msra.mxu0 0.0
          %2068 = vmatprep.subr.mxu0 0.0
          %2069 = vmatpush1.msra.mxu0 0.0
          %2070 = vmatprep.subr.mxu0 0.0
          %2071 = vmatpush1.msra.mxu0 0.0
          %2072 = vmatprep.subr.mxu0 0.0
          %2073 = vmatpush1.msra.mxu0 0.0
          %2074 = vmatprep.mubr.f32.mxu0 0.0
          %2075 = vmatmul.mubr.f32.gmra.mrb[0].mxu0 %v1915
          %v2076 = vpop.f32.mrb[0].mxu0
          %v2077 = vadd.f32 %v1756, %v2076
          %v2078 = vpop.f32.mrb[0].mxu0
          %2079 = vmatprep.mubr.f32.mxu0 0.0
          %2080 = vmatmul.mubr.f32.gmra.mrb[0].mxu0 %v1918
          %v2081 = vpop.f32.mrb[0].mxu0
          %v2082 = vadd.f32 %v1761, %v2081
          %v2083 = vpop.f32.mrb[0].mxu0
          %2084 = vmatprep.mubr.f32.mxu0 0.0
          %2085 = vmatmul.mubr.f32.gmra.mrb[0].mxu0 %v1921
          %v2086 = vpop.f32.mrb[0].mxu0
          %v2087 = vadd.f32 %v1766, %v2086
          %v2088 = vpop.f32.mrb[0].mxu0
          %2089 = vmatprep.mubr.f32.mxu0 0.0
          %2090 = vmatmul.mubr.f32.gmra.mrb[0].mxu0 %v1924
          %v2091 = vpop.f32.mrb[0].mxu0
          %v2092 = vadd.f32 %v1771, %v2091
          %v2093 = vpop.f32.mrb[0].mxu0
          %2094 = vmatprep.mubr.f32.mxu0 0.0
          %2095 = vmatmul.mubr.f32.gmra.mrb[0].mxu0 %v1927
          %v2096 = vpop.f32.mrb[0].mxu0
          %v2097 = vadd.f32 %v1776, %v2096
          %v2098 = vpop.f32.mrb[0].mxu0
          %2099 = vmatprep.mubr.f32.mxu0 0.0
          %2100 = vmatmul.mubr.f32.gmra.mrb[0].mxu0 %v1930
          %v2101 = vpop.f32.mrb[0].mxu0
          %v2102 = vadd.f32 %v1781, %v2101
          %v2103 = vpop.f32.mrb[0].mxu0
          %2104 = vmatprep.mubr.f32.mxu0 0.0
          %2105 = vmatmul.mubr.f32.gmra.mrb[0].mxu0 %v1933
          %v2106 = vpop.f32.mrb[0].mxu0
          %v2107 = vadd.f32 %v1786, %v2106
          %v2108 = vpop.f32.mrb[0].mxu0
          %2109 = vmatprep.mubr.f32.mxu0 0.0
          %2110 = vmatmul.mubr.f32.gmra.mrb[0].mxu0 %v1936
          %v2111 = vpop.f32.mrb[0].mxu0
          %v2112 = vadd.f32 %v1791, %v2111
          %v2113 = vpop.f32.mrb[0].mxu0
          %2114 = vmatprep.mubr.f32.mxu0 0.0
          %2115 = vmatmul.mubr.f32.gmra.mrb[0].mxu0 %v1939
          %v2116 = vpop.f32.mrb[0].mxu0
          %v2117 = vadd.f32 %v1796, %v2116
          %v2118 = vpop.f32.mrb[0].mxu0
          %2119 = vmatprep.mubr.f32.mxu0 0.0
          %2120 = vmatmul.mubr.f32.gmra.mrb[0].mxu0 %v1942
          %v2121 = vpop.f32.mrb[0].mxu0
          %v2122 = vadd.f32 %v1801, %v2121
          %v2123 = vpop.f32.mrb[0].mxu0
          %2124 = vmatprep.mubr.f32.mxu0 0.0
          %2125 = vmatmul.mubr.f32.gmra.mrb[0].mxu0 %v1945
          %v2126 = vpop.f32.mrb[0].mxu0
          %v2127 = vadd.f32 %v1806, %v2126
          %v2128 = vpop.f32.mrb[0].mxu0
          %2129 = vmatprep.mubr.f32.mxu0 0.0
          %2130 = vmatmul.mubr.f32.gmra.mrb[0].mxu0 %v1948
          %v2131 = vpop.f32.mrb[0].mxu0
          %v2132 = vadd.f32 %v1811, %v2131
          %v2133 = vpop.f32.mrb[0].mxu0
          %2134 = vmatprep.mubr.f32.mxu0 0.0
          %2135 = vmatmul.mubr.f32.gmra.mrb[0].mxu0 %v1951
          %v2136 = vpop.f32.mrb[0].mxu0
          %v2137 = vadd.f32 %v1816, %v2136
          %v2138 = vpop.f32.mrb[0].mxu0
          %2139 = vmatprep.mubr.f32.mxu0 0.0
          %2140 = vmatmul.mubr.f32.gmra.mrb[0].mxu0 %v1954
          %v2141 = vpop.f32.mrb[0].mxu0
          %v2142 = vadd.f32 %v1821, %v2141
          %v2143 = vpop.f32.mrb[0].mxu0
          %2144 = vmatprep.mubr.f32.mxu0 0.0
          %2145 = vmatmul.mubr.f32.gmra.mrb[0].mxu0 %v1957
          %v2146 = vpop.f32.mrb[0].mxu0
          %v2147 = vadd.f32 %v1826, %v2146
          %v2148 = vpop.f32.mrb[0].mxu0
          %2149 = vmatprep.mubr.f32.mxu0 0.0
          %2150 = vmatmul.mubr.f32.gmra.mrb[0].mxu0 %v1960
          %v2151 = vpop.f32.mrb[0].mxu0
          %v2152 = vadd.f32 %v1831, %v2151
          %v2153 = vpop.f32.mrb[0].mxu0
          %2154 = vmatprep.mubr.f32.mxu0 0.0
          %2155 = vmatmul.mubr.f32.gmra.mrb[0].mxu0 %v1963
          %v2156 = vpop.f32.mrb[0].mxu0
          %v2157 = vadd.f32 %v1836, %v2156
          %v2158 = vpop.f32.mrb[0].mxu0
          %2159 = vmatprep.mubr.f32.mxu0 0.0
          %2160 = vmatmul.mubr.f32.gmra.mrb[0].mxu0 %v1966
          %v2161 = vpop.f32.mrb[0].mxu0
          %v2162 = vadd.f32 %v1841, %v2161
          %v2163 = vpop.f32.mrb[0].mxu0
          %2164 = vmatprep.mubr.f32.mxu0 0.0
          %2165 = vmatmul.mubr.f32.gmra.mrb[0].mxu0 %v1969
          %v2166 = vpop.f32.mrb[0].mxu0
          %v2167 = vadd.f32 %v1846, %v2166
          %v2168 = vpop.f32.mrb[0].mxu0
          %2169 = vmatprep.mubr.f32.mxu0 0.0
          %2170 = vmatmul.mubr.f32.gmra.mrb[0].mxu0 %v1972
          %v2171 = vpop.f32.mrb[0].mxu0
          %v2172 = vadd.f32 %v1851, %v2171
          %v2173 = vpop.f32.mrb[0].mxu0
          %2174 = vmatprep.mubr.f32.mxu0 0.0
          %2175 = vmatmul.mubr.f32.gmra.mrb[0].mxu0 %v1975
          %v2176 = vpop.f32.mrb[0].mxu0
          %v2177 = vadd.f32 %v1856, %v2176
          %v2178 = vpop.f32.mrb[0].mxu0
          %2179 = vmatprep.mubr.f32.mxu0 0.0
          %2180 = vmatmul.mubr.f32.gmra.mrb[0].mxu0 %v1978
          %v2181 = vpop.f32.mrb[0].mxu0
          %v2182 = vadd.f32 %v1861, %v2181
          %v2183 = vpop.f32.mrb[0].mxu0
          %2184 = vmatprep.mubr.f32.mxu0 0.0
          %2185 = vmatmul.mubr.f32.gmra.mrb[0].mxu0 %v1981
          %v2186 = vpop.f32.mrb[0].mxu0
          %v2187 = vadd.f32 %v1866, %v2186
          %v2188 = vpop.f32.mrb[0].mxu0
          %2189 = vmatprep.mubr.f32.mxu0 0.0
          %2190 = vmatmul.mubr.f32.gmra.mrb[0].mxu0 %v1984
          %v2191 = vpop.f32.mrb[0].mxu0
          %v2192 = vadd.f32 %v1871, %v2191
          %v2193 = vpop.f32.mrb[0].mxu0
          %2194 = vmatprep.mubr.f32.mxu0 0.0
          %2195 = vmatmul.mubr.f32.gmra.mrb[0].mxu0 %v1987
          %v2196 = vpop.f32.mrb[0].mxu0
          %v2197 = vadd.f32 %v1876, %v2196
          %v2198 = vpop.f32.mrb[0].mxu0
          %2199 = vmatprep.mubr.f32.mxu0 0.0
          %2200 = vmatmul.mubr.f32.gmra.mrb[0].mxu0 %v1990
          %v2201 = vpop.f32.mrb[0].mxu0
          %v2202 = vadd.f32 %v1881, %v2201
          %v2203 = vpop.f32.mrb[0].mxu0
          %2204 = vmatprep.mubr.f32.mxu0 0.0
          %2205 = vmatmul.mubr.f32.gmra.mrb[0].mxu0 %v1993
          %v2206 = vpop.f32.mrb[0].mxu0
          %v2207 = vadd.f32 %v1886, %v2206
          %v2208 = vpop.f32.mrb[0].mxu0
          %2209 = vmatprep.mubr.f32.mxu0 0.0
          %2210 = vmatmul.mubr.f32.gmra.mrb[0].mxu0 %v1996
          %v2211 = vpop.f32.mrb[0].mxu0
          %v2212 = vadd.f32 %v1891, %v2211
          %v2213 = vpop.f32.mrb[0].mxu0
          %2214 = vmatprep.mubr.f32.mxu0 0.0
          %2215 = vmatmul.mubr.f32.gmra.mrb[0].mxu0 %v1999
          %v2216 = vpop.f32.mrb[0].mxu0
          %v2217 = vadd.f32 %v1896, %v2216
          %v2218 = vpop.f32.mrb[0].mxu0
          %2219 = vmatprep.mubr.f32.mxu0 0.0
          %2220 = vmatmul.mubr.f32.gmra.mrb[0].mxu0 %v2002
          %v2221 = vpop.f32.mrb[0].mxu0
          %v2222 = vadd.f32 %v1901, %v2221
          %v2223 = vpop.f32.mrb[0].mxu0
          %2224 = vmatprep.mubr.f32.mxu0 0.0
          %2225 = vmatmul.mubr.f32.gmra.mrb[0].mxu0 %v2005
          %v2226 = vpop.f32.mrb[0].mxu0
          %v2227 = vadd.f32 %v1906, %v2226
          %v2228 = vpop.f32.mrb[0].mxu0
          %2229 = vmatprep.mubr.f32.mxu0 0.0
          %2230 = vmatmul.mubr.f32.gmra.mrb[0].mxu0 %v2008
          %v2231 = vpop.f32.mrb[0].mxu0
          %v2232 = vadd.f32 %v1911, %v2231
          %v2233 = vpop.f32.mrb[0].mxu0
          %2234 = vdwg.mxu0
          %v2235 = vld [vmem:[%s8] sm:$0x1]
          %v2237 = vlaneseq
          %v2238 = vshrl.u32 %v2237, 7
          %v2239 = vsub.s32 0, %v2238
          %v2240 = vrot.slane %v2235, %v2239
          %v2242 = vadd.f32 %v2077, %v2240
          %v2243 = vadd.f32 %v2082, %v2240
          %v2244 = vadd.f32 %v2087, %v2240
          %v2245 = vadd.f32 %v2092, %v2240
          %v2246 = vadd.f32 %v2097, %v2240
          %v2247 = vadd.f32 %v2102, %v2240
          %v2248 = vadd.f32 %v2107, %v2240
          %v2249 = vadd.f32 %v2112, %v2240
          %v2250 = vadd.f32 %v2117, %v2240
          %v2251 = vadd.f32 %v2122, %v2240
          %v2252 = vadd.f32 %v2127, %v2240
          %v2253 = vadd.f32 %v2132, %v2240
          %v2254 = vadd.f32 %v2137, %v2240
          %v2255 = vadd.f32 %v2142, %v2240
          %v2256 = vadd.f32 %v2147, %v2240
          %v2257 = vadd.f32 %v2152, %v2240
          %v2258 = vadd.f32 %v2157, %v2240
          %v2259 = vadd.f32 %v2162, %v2240
          %v2260 = vadd.f32 %v2167, %v2240
          %v2261 = vadd.f32 %v2172, %v2240
          %v2262 = vadd.f32 %v2177, %v2240
          %v2263 = vadd.f32 %v2182, %v2240
          %v2264 = vadd.f32 %v2187, %v2240
          %v2265 = vadd.f32 %v2192, %v2240
          %v2266 = vadd.f32 %v2197, %v2240
          %v2267 = vadd.f32 %v2202, %v2240
          %v2268 = vadd.f32 %v2207, %v2240
          %v2269 = vadd.f32 %v2212, %v2240
          %v2270 = vadd.f32 %v2217, %v2240
          %v2271 = vadd.f32 %v2222, %v2240
          %v2272 = vadd.f32 %v2227, %v2240
          %v2273 = vadd.f32 %v2232, %v2240
          %v2274 = vmax.f32 %v2242, 0.0
          %v2275 = vmax.f32 %v2243, 0.0
          %v2276 = vmax.f32 %v2244, 0.0
          %v2277 = vmax.f32 %v2245, 0.0
          %v2278 = vmax.f32 %v2246, 0.0
          %v2279 = vmax.f32 %v2247, 0.0
          %v2280 = vmax.f32 %v2248, 0.0
          %v2281 = vmax.f32 %v2249, 0.0
          %v2282 = vmax.f32 %v2250, 0.0
          %v2283 = vmax.f32 %v2251, 0.0
          %v2284 = vmax.f32 %v2252, 0.0
          %v2285 = vmax.f32 %v2253, 0.0
          %v2286 = vmax.f32 %v2254, 0.0
          %v2287 = vmax.f32 %v2255, 0.0
          %v2288 = vmax.f32 %v2256, 0.0
          %v2289 = vmax.f32 %v2257, 0.0
          %v2290 = vmax.f32 %v2258, 0.0
          %v2291 = vmax.f32 %v2259, 0.0
          %v2292 = vmax.f32 %v2260, 0.0
          %v2293 = vmax.f32 %v2261, 0.0
          %v2294 = vmax.f32 %v2262, 0.0
          %v2295 = vmax.f32 %v2263, 0.0
          %v2296 = vmax.f32 %v2264, 0.0
          %v2297 = vmax.f32 %v2265, 0.0
          %v2298 = vmax.f32 %v2266, 0.0
          %v2299 = vmax.f32 %v2267, 0.0
          %v2300 = vmax.f32 %v2268, 0.0
          %v2301 = vmax.f32 %v2269, 0.0
          %v2302 = vmax.f32 %v2270, 0.0
          %v2303 = vmax.f32 %v2271, 0.0
          %v2304 = vmax.f32 %v2272, 0.0
          %v2305 = vmax.f32 %v2273, 0.0
          %v2306 = vld [vmem:[%s9] sm:$0xff]
          %v2307 = vld [vmem:[%s9 + $0x8] sm:$0xff]
          %v2308 = vld [vmem:[%s9 + $0x10] sm:$0xff]
          %v2309 = vld [vmem:[%s9 + $0x18] sm:$0xff]
          %vm2310 = vcmask 261120
          %v2312 = vsel %vm2310, %v2274, 0
          %v2315 = vsel %vm2310, %v2275, 0
          %v2318 = vsel %vm2310, %v2276, 0
          %v2321 = vsel %vm2310, %v2277, 0
          %v2324 = vsel %vm2310, %v2278, 0
          %v2327 = vsel %vm2310, %v2279, 0
          %v2330 = vsel %vm2310, %v2280, 0
          %v2333 = vsel %vm2310, %v2281, 0
          %v2336 = vsel %vm2310, %v2282, 0
          %v2339 = vsel %vm2310, %v2283, 0
          %v2342 = vsel %vm2310, %v2284, 0
          %v2345 = vsel %vm2310, %v2285, 0
          %v2348 = vsel %vm2310, %v2286, 0
          %v2351 = vsel %vm2310, %v2287, 0
          %v2354 = vsel %vm2310, %v2288, 0
          %v2357 = vsel %vm2310, %v2289, 0
          %v2360 = vsel %vm2310, %v2290, 0
          %v2363 = vsel %vm2310, %v2291, 0
          %v2366 = vsel %vm2310, %v2292, 0
          %v2369 = vsel %vm2310, %v2293, 0
          %v2372 = vsel %vm2310, %v2294, 0
          %v2375 = vsel %vm2310, %v2295, 0
          %v2378 = vsel %vm2310, %v2296, 0
          %v2381 = vsel %vm2310, %v2297, 0
          %v2384 = vsel %vm2310, %v2298, 0
          %v2387 = vsel %vm2310, %v2299, 0
          %v2390 = vsel %vm2310, %v2300, 0
          %v2393 = vsel %vm2310, %v2301, 0
          %v2396 = vsel %vm2310, %v2302, 0
          %v2399 = vsel %vm2310, %v2303, 0
          %v2402 = vsel %vm2310, %v2304, 0
          %v2405 = vsel %vm2310, %v2305, 0
          %2407 = vmatprep.subr.mxu0 0.0
          %2408 = vmatpush1.msra.mxu0 %v2306
          %2409 = vmatprep.subr.mxu0 0.0
          %2410 = vmatpush1.msra.mxu0 %v2307
          %2411 = vmatprep.subr.mxu0 0.0
          %2412 = vmatpush1.msra.mxu0 %v2308
          %2413 = vmatprep.subr.mxu0 0.0
          %2414 = vmatpush1.msra.mxu0 %v2309
          %2415 = vmatprep.subr.mxu0 0.0
          %2416 = vmatpush1.msra.mxu0 0.0
          %2417 = vmatprep.subr.mxu0 0.0
          %2418 = vmatpush1.msra.mxu0 0.0
          %2419 = vmatprep.subr.mxu0 0.0
          %2420 = vmatpush1.msra.mxu0 0.0
          %2421 = vmatprep.subr.mxu0 0.0
          %2422 = vmatpush1.msra.mxu0 0.0
          %2423 = vmatprep.subr.mxu0 0.0
          %2424 = vmatpush1.msra.mxu0 0.0
          %2425 = vmatprep.subr.mxu0 0.0
          %2426 = vmatpush1.msra.mxu0 0.0
          %2427 = vmatprep.subr.mxu0 0.0
          %2428 = vmatpush1.msra.mxu0 0.0
          %2429 = vmatprep.subr.mxu0 0.0
          %2430 = vmatpush1.msra.mxu0 0.0
          %2431 = vmatprep.subr.mxu0 0.0
          %2432 = vmatpush1.msra.mxu0 0.0
          %2433 = vmatprep.subr.mxu0 0.0
          %2434 = vmatpush1.msra.mxu0 0.0
          %2435 = vmatprep.subr.mxu0 0.0
          %2436 = vmatpush1.msra.mxu0 0.0
          %2437 = vmatprep.subr.mxu0 0.0
          %2438 = vmatpush1.msra.mxu0 0.0
          %2439 = vmatprep.subr.mxu0 0.0
          %2440 = vmatpush1.msra.mxu0 0.0
          %2441 = vmatprep.subr.mxu0 0.0
          %2442 = vmatpush1.msra.mxu0 0.0
          %2443 = vmatprep.subr.mxu0 0.0
          %2444 = vmatpush1.msra.mxu0 0.0
          %2445 = vmatprep.subr.mxu0 0.0
          %2446 = vmatpush1.msra.mxu0 0.0
          %2447 = vmatprep.subr.mxu0 0.0
          %2448 = vmatpush1.msra.mxu0 0.0
          %2449 = vmatprep.subr.mxu0 0.0
          %2450 = vmatpush1.msra.mxu0 0.0
          %2451 = vmatprep.subr.mxu0 0.0
          %2452 = vmatpush1.msra.mxu0 0.0
          %2453 = vmatprep.subr.mxu0 0.0
          %2454 = vmatpush1.msra.mxu0 0.0
          %2455 = vmatprep.subr.mxu0 0.0
          %2456 = vmatpush1.msra.mxu0 0.0
          %2457 = vmatprep.subr.mxu0 0.0
          %2458 = vmatpush1.msra.mxu0 0.0
          %2459 = vmatprep.subr.mxu0 0.0
          %2460 = vmatpush1.msra.mxu0 0.0
          %2461 = vmatprep.subr.mxu0 0.0
          %2462 = vmatpush1.msra.mxu0 0.0
          %2463 = vmatprep.subr.mxu0 0.0
          %2464 = vmatpush1.msra.mxu0 0.0
          %2465 = vmatprep.subr.mxu0 0.0
          %2466 = vmatpush1.msra.mxu0 0.0
          %2467 = vmatprep.subr.mxu0 0.0
          %2468 = vmatpush1.msra.mxu0 0.0
          %2469 = vmatprep.subr.mxu0 0.0
          %2470 = vmatpush1.msra.mxu0 0.0
          %2471 = vmatprep.mubr.f32.mxu0 0.0
          %2472 = vmatmul.mubr.f32.gmra.mrb[0].mxu0 %v2312
          %v2473 = vpop.f32.mrb[0].mxu0
          %v2474 = vadd.f32 0.0, %v2473
          %v2475 = vpop.f32.mrb[0].mxu0
          %2476 = vmatprep.mubr.f32.mxu0 0.0
          %2477 = vmatmul.mubr.f32.gmra.mrb[0].mxu0 %v2315
          %v2478 = vpop.f32.mrb[0].mxu0
          %v2479 = vadd.f32 0.0, %v2478
          %v2480 = vpop.f32.mrb[0].mxu0
          %2481 = vmatprep.mubr.f32.mxu0 0.0
          %2482 = vmatmul.mubr.f32.gmra.mrb[0].mxu0 %v2318
          %v2483 = vpop.f32.mrb[0].mxu0
          %v2484 = vadd.f32 0.0, %v2483
          %v2485 = vpop.f32.mrb[0].mxu0
          %2486 = vmatprep.mubr.f32.mxu0 0.0
          %2487 = vmatmul.mubr.f32.gmra.mrb[0].mxu0 %v2321
          %v2488 = vpop.f32.mrb[0].mxu0
          %v2489 = vadd.f32 0.0, %v2488
          %v2490 = vpop.f32.mrb[0].mxu0
          %2491 = vmatprep.mubr.f32.mxu0 0.0
          %2492 = vmatmul.mubr.f32.gmra.mrb[0].mxu0 %v2324
          %v2493 = vpop.f32.mrb[0].mxu0
          %v2494 = vadd.f32 0.0, %v2493
          %v2495 = vpop.f32.mrb[0].mxu0
          %2496 = vmatprep.mubr.f32.mxu0 0.0
          %2497 = vmatmul.mubr.f32.gmra.mrb[0].mxu0 %v2327
          %v2498 = vpop.f32.mrb[0].mxu0
          %v2499 = vadd.f32 0.0, %v2498
          %v2500 = vpop.f32.mrb[0].mxu0
          %2501 = vmatprep.mubr.f32.mxu0 0.0
          %2502 = vmatmul.mubr.f32.gmra.mrb[0].mxu0 %v2330
          %v2503 = vpop.f32.mrb[0].mxu0
          %v2504 = vadd.f32 0.0, %v2503
          %v2505 = vpop.f32.mrb[0].mxu0
          %2506 = vmatprep.mubr.f32.mxu0 0.0
          %2507 = vmatmul.mubr.f32.gmra.mrb[0].mxu0 %v2333
          %v2508 = vpop.f32.mrb[0].mxu0
          %v2509 = vadd.f32 0.0, %v2508
          %v2510 = vpop.f32.mrb[0].mxu0
          %2511 = vmatprep.mubr.f32.mxu0 0.0
          %2512 = vmatmul.mubr.f32.gmra.mrb[0].mxu0 %v2336
          %v2513 = vpop.f32.mrb[0].mxu0
          %v2514 = vadd.f32 0.0, %v2513
          %v2515 = vpop.f32.mrb[0].mxu0
          %2516 = vmatprep.mubr.f32.mxu0 0.0
          %2517 = vmatmul.mubr.f32.gmra.mrb[0].mxu0 %v2339
          %v2518 = vpop.f32.mrb[0].mxu0
          %v2519 = vadd.f32 0.0, %v2518
          %v2520 = vpop.f32.mrb[0].mxu0
          %2521 = vmatprep.mubr.f32.mxu0 0.0
          %2522 = vmatmul.mubr.f32.gmra.mrb[0].mxu0 %v2342
          %v2523 = vpop.f32.mrb[0].mxu0
          %v2524 = vadd.f32 0.0, %v2523
          %v2525 = vpop.f32.mrb[0].mxu0
          %2526 = vmatprep.mubr.f32.mxu0 0.0
          %2527 = vmatmul.mubr.f32.gmra.mrb[0].mxu0 %v2345
          %v2528 = vpop.f32.mrb[0].mxu0
          %v2529 = vadd.f32 0.0, %v2528
          %v2530 = vpop.f32.mrb[0].mxu0
          %2531 = vmatprep.mubr.f32.mxu0 0.0
          %2532 = vmatmul.mubr.f32.gmra.mrb[0].mxu0 %v2348
          %v2533 = vpop.f32.mrb[0].mxu0
          %v2534 = vadd.f32 0.0, %v2533
          %v2535 = vpop.f32.mrb[0].mxu0
          %2536 = vmatprep.mubr.f32.mxu0 0.0
          %2537 = vmatmul.mubr.f32.gmra.mrb[0].mxu0 %v2351
          %v2538 = vpop.f32.mrb[0].mxu0
          %v2539 = vadd.f32 0.0, %v2538
          %v2540 = vpop.f32.mrb[0].mxu0
          %2541 = vmatprep.mubr.f32.mxu0 0.0
          %2542 = vmatmul.mubr.f32.gmra.mrb[0].mxu0 %v2354
          %v2543 = vpop.f32.mrb[0].mxu0
          %v2544 = vadd.f32 0.0, %v2543
          %v2545 = vpop.f32.mrb[0].mxu0
          %2546 = vmatprep.mubr.f32.mxu0 0.0
          %2547 = vmatmul.mubr.f32.gmra.mrb[0].mxu0 %v2357
          %v2548 = vpop.f32.mrb[0].mxu0
          %v2549 = vadd.f32 0.0, %v2548
          %v2550 = vpop.f32.mrb[0].mxu0
          %2551 = vmatprep.mubr.f32.mxu0 0.0
          %2552 = vmatmul.mubr.f32.gmra.mrb[0].mxu0 %v2360
          %v2553 = vpop.f32.mrb[0].mxu0
          %v2554 = vadd.f32 0.0, %v2553
          %v2555 = vpop.f32.mrb[0].mxu0
          %2556 = vmatprep.mubr.f32.mxu0 0.0
          %2557 = vmatmul.mubr.f32.gmra.mrb[0].mxu0 %v2363
          %v2558 = vpop.f32.mrb[0].mxu0
          %v2559 = vadd.f32 0.0, %v2558
          %v2560 = vpop.f32.mrb[0].mxu0
          %2561 = vmatprep.mubr.f32.mxu0 0.0
          %2562 = vmatmul.mubr.f32.gmra.mrb[0].mxu0 %v2366
          %v2563 = vpop.f32.mrb[0].mxu0
          %v2564 = vadd.f32 0.0, %v2563
          %v2565 = vpop.f32.mrb[0].mxu0
          %2566 = vmatprep.mubr.f32.mxu0 0.0
          %2567 = vmatmul.mubr.f32.gmra.mrb[0].mxu0 %v2369
          %v2568 = vpop.f32.mrb[0].mxu0
          %v2569 = vadd.f32 0.0, %v2568
          %v2570 = vpop.f32.mrb[0].mxu0
          %2571 = vmatprep.mubr.f32.mxu0 0.0
          %2572 = vmatmul.mubr.f32.gmra.mrb[0].mxu0 %v2372
          %v2573 = vpop.f32.mrb[0].mxu0
          %v2574 = vadd.f32 0.0, %v2573
          %v2575 = vpop.f32.mrb[0].mxu0
          %2576 = vmatprep.mubr.f32.mxu0 0.0
          %2577 = vmatmul.mubr.f32.gmra.mrb[0].mxu0 %v2375
          %v2578 = vpop.f32.mrb[0].mxu0
          %v2579 = vadd.f32 0.0, %v2578
          %v2580 = vpop.f32.mrb[0].mxu0
          %2581 = vmatprep.mubr.f32.mxu0 0.0
          %2582 = vmatmul.mubr.f32.gmra.mrb[0].mxu0 %v2378
          %v2583 = vpop.f32.mrb[0].mxu0
          %v2584 = vadd.f32 0.0, %v2583
          %v2585 = vpop.f32.mrb[0].mxu0
          %2586 = vmatprep.mubr.f32.mxu0 0.0
          %2587 = vmatmul.mubr.f32.gmra.mrb[0].mxu0 %v2381
          %v2588 = vpop.f32.mrb[0].mxu0
          %v2589 = vadd.f32 0.0, %v2588
          %v2590 = vpop.f32.mrb[0].mxu0
          %2591 = vmatprep.mubr.f32.mxu0 0.0
          %2592 = vmatmul.mubr.f32.gmra.mrb[0].mxu0 %v2384
          %v2593 = vpop.f32.mrb[0].mxu0
          %v2594 = vadd.f32 0.0, %v2593
          %v2595 = vpop.f32.mrb[0].mxu0
          %2596 = vmatprep.mubr.f32.mxu0 0.0
          %2597 = vmatmul.mubr.f32.gmra.mrb[0].mxu0 %v2387
          %v2598 = vpop.f32.mrb[0].mxu0
          %v2599 = vadd.f32 0.0, %v2598
          %v2600 = vpop.f32.mrb[0].mxu0
          %2601 = vmatprep.mubr.f32.mxu0 0.0
          %2602 = vmatmul.mubr.f32.gmra.mrb[0].mxu0 %v2390
          %v2603 = vpop.f32.mrb[0].mxu0
          %v2604 = vadd.f32 0.0, %v2603
          %v2605 = vpop.f32.mrb[0].mxu0
          %2606 = vmatprep.mubr.f32.mxu0 0.0
          %2607 = vmatmul.mubr.f32.gmra.mrb[0].mxu0 %v2393
          %v2608 = vpop.f32.mrb[0].mxu0
          %v2609 = vadd.f32 0.0, %v2608
          %v2610 = vpop.f32.mrb[0].mxu0
          %2611 = vmatprep.mubr.f32.mxu0 0.0
          %2612 = vmatmul.mubr.f32.gmra.mrb[0].mxu0 %v2396
          %v2613 = vpop.f32.mrb[0].mxu0
          %v2614 = vadd.f32 0.0, %v2613
          %v2615 = vpop.f32.mrb[0].mxu0
          %2616 = vmatprep.mubr.f32.mxu0 0.0
          %2617 = vmatmul.mubr.f32.gmra.mrb[0].mxu0 %v2399
          %v2618 = vpop.f32.mrb[0].mxu0
          %v2619 = vadd.f32 0.0, %v2618
          %v2620 = vpop.f32.mrb[0].mxu0
          %2621 = vmatprep.mubr.f32.mxu0 0.0
          %2622 = vmatmul.mubr.f32.gmra.mrb[0].mxu0 %v2402
          %v2623 = vpop.f32.mrb[0].mxu0
          %v2624 = vadd.f32 0.0, %v2623
          %v2625 = vpop.f32.mrb[0].mxu0
          %2626 = vmatprep.mubr.f32.mxu0 0.0
          %2627 = vmatmul.mubr.f32.gmra.mrb[0].mxu0 %v2405
          %v2628 = vpop.f32.mrb[0].mxu0
          %v2629 = vadd.f32 0.0, %v2628
          %v2630 = vpop.f32.mrb[0].mxu0
          %2631 = vdwg.mxu0
          %vm2632 = vcmask 15360
          %2633 = vst.msk [vmem:[%s474] sm:$0xff] %vm2632, %v2474
          %2634 = vst.msk [vmem:[%s474 + $0x8] sm:$0xff] %vm2632, %v2479
          %2635 = vst.msk [vmem:[%s474 + $0x10] sm:$0xff] %vm2632, %v2484
          %2636 = vst.msk [vmem:[%s474 + $0x18] sm:$0xff] %vm2632, %v2489
          %2637 = vst.msk [vmem:[%s474 + $0x20] sm:$0xff] %vm2632, %v2494
          %2638 = vst.msk [vmem:[%s474 + $0x28] sm:$0xff] %vm2632, %v2499
          %2639 = vst.msk [vmem:[%s474 + $0x30] sm:$0xff] %vm2632, %v2504
          %2640 = vst.msk [vmem:[%s474 + $0x38] sm:$0xff] %vm2632, %v2509
          %2641 = vst.msk [vmem:[%s474 + $0x40] sm:$0xff] %vm2632, %v2514
          %2642 = vst.msk [vmem:[%s474 + $0x48] sm:$0xff] %vm2632, %v2519
          %2643 = vst.msk [vmem:[%s474 + $0x50] sm:$0xff] %vm2632, %v2524
          %2644 = vst.msk [vmem:[%s474 + $0x58] sm:$0xff] %vm2632, %v2529
          %2645 = vst.msk [vmem:[%s474 + $0x60] sm:$0xff] %vm2632, %v2534
          %2646 = vst.msk [vmem:[%s474 + $0x68] sm:$0xff] %vm2632, %v2539
          %2647 = vst.msk [vmem:[%s474 + $0x70] sm:$0xff] %vm2632, %v2544
          %2648 = vst.msk [vmem:[%s474 + $0x78] sm:$0xff] %vm2632, %v2549
          %2649 = vst.msk [vmem:[%s474 + $0x80] sm:$0xff] %vm2632, %v2554
          %2650 = vst.msk [vmem:[%s474 + $0x88] sm:$0xff] %vm2632, %v2559
          %2651 = vst.msk [vmem:[%s474 + $0x90] sm:$0xff] %vm2632, %v2564
          %2652 = vst.msk [vmem:[%s474 + $0x98] sm:$0xff] %vm2632, %v2569
          %2653 = vst.msk [vmem:[%s474 + $0xa0] sm:$0xff] %vm2632, %v2574
          %2654 = vst.msk [vmem:[%s474 + $0xa8] sm:$0xff] %vm2632, %v2579
          %2655 = vst.msk [vmem:[%s474 + $0xb0] sm:$0xff] %vm2632, %v2584
          %2656 = vst.msk [vmem:[%s474 + $0xb8] sm:$0xff] %vm2632, %v2589
          %2657 = vst.msk [vmem:[%s474 + $0xc0] sm:$0xff] %vm2632, %v2594
          %2658 = vst.msk [vmem:[%s474 + $0xc8] sm:$0xff] %vm2632, %v2599
          %2659 = vst.msk [vmem:[%s474 + $0xd0] sm:$0xff] %vm2632, %v2604
          %2660 = vst.msk [vmem:[%s474 + $0xd8] sm:$0xff] %vm2632, %v2609
          %2661 = vst.msk [vmem:[%s474 + $0xe0] sm:$0xff] %vm2632, %v2614
          %2662 = vst.msk [vmem:[%s474 + $0xe8] sm:$0xff] %vm2632, %v2619
          %2663 = vst.msk [vmem:[%s474 + $0xf0] sm:$0xff] %vm2632, %v2624
          %2664 = vst.msk [vmem:[%s474 + $0xf8] sm:$0xff] %vm2632, %v2629
        $region87: #{tpu_custom_call.1} parent=70 // pred_fallthru
          _
        %s2665 = smul.u32 32, %s35
        %p2666 = scmp.lt.s32.totalorder %s2665, 127
        %s2667 = scalar_select %p2666, %s2665, 127
        %s2668 = smul.addr %s2667, 8
        %s2669 = scalar_lea.vmem %s10, %s2668
        // Predicated region
        $region88: #{tpu_custom_call.1} parent=70 // pred_check
          %p2670 = pneg %p252
        $region89: #{tpu_custom_call.1} parent=70 // pred_check_branch
          %2672 = sbr.rel (%p2670) target = $region91
        $region90: #{tpu_custom_call.1} parent=70 // pred_region
          %s2673 = smul.u32 32, %s35
        $region91: #{tpu_custom_call.1} parent=70 // pred_fallthru
          _
      $region71: #{tpu_custom_call.1} parent=5 // pred_fallthru
        _
      %p2674 = scmp.le.s32.totalorder 2, %s26
      // Predicated region
      $region92: #{tpu_custom_call.1} parent=5 // pred_check
        %p2675 = pneg %p2674
      $region93: #{tpu_custom_call.1} parent=5 // pred_check_branch
        %2677 = sbr.rel (%p2675) target = $region95
      $region94: #{tpu_custom_call.1} parent=5 // pred_region
        %s2678 = ssub.s32 %s26, 2
        // Predicated region
        $region96: #{tpu_custom_call.1} parent=94 // pred_check
          %p2679 = pneg %p258
        $region97: #{tpu_custom_call.1} parent=94 // pred_check_branch
          %2681 = sbr.rel (%p2679) target = $region99
        $region98: #{tpu_custom_call.1} parent=94 // pred_region
          %s2682 = smul.u32 32, %s37
          %p2683 = scmp.lt.s32.totalorder %s2682, 127
          %s2684 = scalar_select %p2683, %s2682, 127
          %s2685 = smul.addr %s2684, 8
          %s2686 = scalar_lea.vmem %s10, %s2685
        $region99: #{tpu_custom_call.1} parent=94 // pred_fallthru
          _
      $region95: #{tpu_custom_call.1} parent=5 // pred_fallthru
        _
    $region6: #{tpu_custom_call.1} parent=1 // loop_footer
      %s30 = sadd.s32 1, %s26
    $region7: #{tpu_custom_call.1} parent=1 // loop_footer_branch
      %25 = sbr.rel target = $region3
    $region8: #{tpu_custom_call.1} parent=1 // loop_exit
      _

</llo_original>
